<compile_context>
chip_gen: v6e
topology: v6e:2x2x1
jax: 0.10.0
libtpu: 0.0.40
codegen_flags: <defaults>
</compile_context>

<pallas_src>
import functools

import jax
import jax.numpy as jnp
import numpy as np
from jax.experimental import pallas as pl
from jax.experimental.pallas import tpu as pltpu


# ----------------------------- Pallas kernel ------------------------------

def _temporal_block_kernel(x_ref, halo_ref, w1_ref, b1_ref, w2_ref, b2_ref,
                           wd_ref, bd_ref, o_ref, win_ref, h1_ref,
                           *, K, d, p, TL, Hp):
    """One (batch, time-tile) grid point of the TemporalBlock forward.

    x_ref    : (1, C, TL)      current time tile of x              (bf16)
    halo_ref : (1, 1, C, Hp)   Hp (>=2p, mult of 128) cols before  (bf16)
    w1_ref   : (K, O, C)       conv1 weight, one (O,C) slab / tap  (bf16)
    b1_ref   : (O, 1)          conv1 bias                          (f32)
    w2_ref   : (K, O, O)       conv2 weight, one (O,O) slab / tap  (bf16)
    b2_ref   : (O, 1)          conv2 bias                          (f32)
    wd_ref   : (O, C)          1x1 downsample weight               (bf16)
    bd_ref   : (O, 1)          downsample bias                     (f32)
    o_ref    : (1, O, TL)      output tile
    win_ref  : (C, Hp+TL)      VMEM scratch: causal window          (bf16)
    h1_ref   : (O, TL+p)       VMEM scratch: conv1 activation       (bf16)
    """
    TW = TL + p                      # conv1 computed for TL + p columns
    base = Hp - 2 * p                # first window column any tap touches
    j = pl.program_id(1)             # time-tile index

    # Assemble the causal window [halo | current tile] in VMEM scratch.
    # Both stores are lane-group aligned (Hp is a multiple of 128).
    win_ref[:, :Hp] = halo_ref[0, 0]
    win_ref[:, Hp:] = x_ref[0]

    # --- conv1 (dilated causal): K accumulated matmuls, f32 accumulation ---
    acc1 = jnp.dot(w1_ref[0], win_ref[:, base:base + TW],
                   preferred_element_type=jnp.float32)            # (O, TW)
    for k in range(1, K):
        off = base + k * d
        acc1 = acc1 + jnp.dot(w1_ref[k], win_ref[:, off:off + TW],
                              preferred_element_type=jnp.float32)
    h1 = jnp.maximum(acc1 + b1_ref[...], 0.0)                      # f32 epilogue
    h1_ref[...] = h1.astype(h1_ref.dtype)
    # dropout1: identity in eval mode.
    # TODO(synk): training-mode dropout (per-(n,j) PRNG mask) not implemented.

    @pl.when(j == 0)
    def _():
        # Very first tile: the p left columns of h1 are negative time, i.e.
        # conv2's causal zero padding.  Cold path, skipped for all j > 0.
        h1_ref[:, :p] = jnp.zeros((h1_ref.shape[0], p), h1_ref.dtype)

    # --- conv2 (dilated causal): K accumulated matmuls ---
    acc2 = jnp.dot(w2_ref[0], h1_ref[:, 0:TL],
                   preferred_element_type=jnp.float32)             # (O, TL)
    for k in range(1, K):
        off = k * d
        acc2 = acc2 + jnp.dot(w2_ref[k], h1_ref[:, off:off + TL],
                              preferred_element_type=jnp.float32)
    h2 = jnp.maximum(acc2 + b2_ref[...], 0.0)
    # dropout2: identity in eval mode.

    # --- residual (1x1 downsample) + final ReLU ---
    # Kept as its own matmul: ReLU(conv2+b2) happens before adding res+bd,
    # so it cannot be sum-fused into conv2's contraction.
    res = jnp.dot(wd_ref[...], x_ref[0],
                  preferred_element_type=jnp.float32) + bd_ref[...]
    o_ref[0] = jnp.maximum(h2 + res, 0.0).astype(o_ref.dtype)


def temporal_block(x, w1, b1, w2, b2, wd, bd, *, kernel_size, dilation,
                   time_tile=512, vmem_budget_bytes=40 * 1024 * 1024):
    """x: (N, C, L) float32.  Weights already weight-normalized (f32).

    w1: (O, C, K), w2: (O, O, K), wd: (O, C), biases: (O,)
    """
    N, C, L = x.shape
    K = kernel_size
    d = dilation
    p = (K - 1) * d                        # chomp size == causal left pad
    if p <= 0:
        raise NotImplementedError("kernel_size must be > 1 (p > 0).")
    O = w1.shape[0]

    # Lane-dense halo width (>= 2p, multiple of 128) -> one dense DMA
    # descriptor per channel row instead of a strided 2p-wide partial load.
    Hp = ((2 * p + 127) // 128) * 128

    # Rough per-tile VMEM estimate (double-buffered inputs/outputs, weights,
    # scratch, accumulator headroom) used to auto-shrink TL for the 64 MiB
    # physical VMEM on v7x.
    def _vmem_est(tl):
        tw = tl + p
        return (2 * C * tl * 2 + 2 * C * Hp * 2 + 2 * O * tl * 4
                + 2 * (K * O * C + K * O * O + O * C) * 2 + 6 * O * 4
                + C * (Hp + tl) * 2 + O * tw * 2 + 3 * O * tw * 4)

    # Time tile: multiple of 128, >= halo width, within VMEM budget.
    TL = ((max(int(time_tile), Hp) + 127) // 128) * 128
    while TL > Hp and TL > 128 and _vmem_est(TL) > vmem_budget_bytes:
        TL -= 128
    n_t = -(-L // TL)
    Lpad = n_t * TL

    # bf16 operands for the MXU; biases stay f32.
    xb = x.astype(jnp.bfloat16)
    x_r = jnp.pad(xb, ((0, 0), (0, 0), (0, Lpad - L)))        # (N, C, Lpad)

    # Per-tile causal halo (N, n_t, C, Hp): the Hp columns of x preceding
    # each tile (zeros for the first tile).  Built from x_r with a cheap
    # reshape+slice -- no full padded copy of x.
    zeros0 = jnp.zeros((N, C, 1, Hp), xb.dtype)
    if n_t > 1:
        prev = x_r[:, :, :(n_t - 1) * TL].reshape(N, C, n_t - 1, TL)
        prev = prev[:, :, :, TL - Hp:]                        # (N, C, n_t-1, Hp)
        halo = jnp.concatenate([zeros0, prev], axis=2)        # (N, C, n_t, Hp)
    else:
        halo = zeros0
    halo = jnp.transpose(halo, (0, 2, 1, 3))                  # (N, n_t, C, Hp)

    # Per-tap weight slabs: w[o, c, k] -> w_t[k, o, c].
    w1_t = jnp.transpose(w1, (2, 0, 1)).astype(jnp.bfloat16)  # (K, O, C)
    w2_t = jnp.transpose(w2, (2, 0, 1)).astype(jnp.bfloat16)  # (K, O, O)
    wd_b = wd.astype(jnp.bfloat16)
    b1_2, b2_2, bd_2 = b1[:, None], b2[:, None], bd[:, None]

    kernel = functools.partial(_temporal_block_kernel,
                               K=K, d=d, p=p, TL=TL, Hp=Hp)

    vmem_limit = int(min(48 * 1024 * 1024,
                         max(32 * 1024 * 1024, 2 * _vmem_est(TL))))

    out = pl.pallas_call(
        kernel,
        out_shape=jax.ShapeDtypeStruct((N, O, Lpad), x.dtype),
        grid_spec=pltpu.PrefetchScalarGridSpec(
            num_scalar_prefetch=0,
            grid=(N, n_t),
            in_specs=[
                pl.BlockSpec((1, C, TL),    lambda n, j: (n, 0, j)),
                pl.BlockSpec((1, 1, C, Hp), lambda n, j: (n, j, 0, 0)),
                pl.BlockSpec((K, O, C),     lambda n, j: (0, 0, 0)),
                pl.BlockSpec((O, 1),        lambda n, j: (0, 0)),
                pl.BlockSpec((K, O, O),     lambda n, j: (0, 0, 0)),
                pl.BlockSpec((O, 1),        lambda n, j: (0, 0)),
                pl.BlockSpec((O, C),        lambda n, j: (0, 0)),
                pl.BlockSpec((O, 1),        lambda n, j: (0, 0)),
            ],
            out_specs=pl.BlockSpec((1, O, TL), lambda n, j: (n, 0, j)),
            scratch_shapes=[
                pltpu.VMEM((C, Hp + TL), jnp.bfloat16),   # causal window
                pltpu.VMEM((O, TL + p), jnp.bfloat16),    # conv1 activation
            ],
        ),
        compiler_params=pltpu.CompilerParams(
            dimension_semantics=("parallel", "parallel"),
            vmem_limit_bytes=vmem_limit),
    )(x_r, halo, w1_t, b1_2, w2_t, b2_2, wd_b, bd_2)

    return out[:, :, :L]


# ------------------------- parameter construction -------------------------

def weight_norm(v, g, eps=1e-12):
    """PyTorch weight_norm (dim=0): w = g * v / ||v|| per output channel."""
    norm = jnp.sqrt(jnp.sum(v * v, axis=(1, 2), keepdims=True) + eps)
    return g[:, None, None] * v / norm


def make_params(key, n_inputs, n_outputs, kernel_size):
    ks = jax.random.split(key, 8)
    v1 = 0.01 * jax.random.normal(ks[0], (n_outputs, n_inputs, kernel_size), jnp.float32)
    g1 = 1.0 + 0.1 * jax.random.normal(ks[1], (n_outputs,), jnp.float32)
    b1 = 0.05 * jax.random.normal(ks[2], (n_outputs,), jnp.float32)
    v2 = 0.01 * jax.random.normal(ks[3], (n_outputs, n_outputs, kernel_size), jnp.float32)
    g2 = 1.0 + 0.1 * jax.random.normal(ks[4], (n_outputs,), jnp.float32)
    b2 = 0.05 * jax.random.normal(ks[5], (n_outputs,), jnp.float32)
    wd = 0.01 * jax.random.normal(ks[6], (n_outputs, n_inputs, 1), jnp.float32)
    bd = 0.05 * jax.random.normal(ks[7], (n_outputs,), jnp.float32)
    w1 = weight_norm(v1, g1)
    w2 = weight_norm(v2, g2)
    return w1, b1, w2, b2, wd[:, :, 0], bd


# ------------------------------ JAX reference ------------------------------

def _conv1d_ref(x, w, b, dilation, padding):
    y = jax.lax.conv_general_dilated(
        x, w, window_strides=(1,), padding=[(padding, padding)],
        rhs_dilation=(dilation,), dimension_numbers=("NCH", "OIH", "NCH"),
        preferred_element_type=jnp.float32)
    return y + b[None, :, None]


def temporal_block_ref(x, w1, b1, w2, b2, wd, bd, *, kernel_size, dilation):
    """Pure-JAX reference mirroring the kernel's bf16-operand / f32-acc math."""
    p = (kernel_size - 1) * dilation
    L = x.shape[2]
    xb = x.astype(jnp.bfloat16)
    h = _conv1d_ref(xb, w1.astype(jnp.bfloat16), b1, dilation, p)[:, :, :L]
    h = jnp.maximum(h, 0.0)                                  # relu1 (+dropout=id)
    h = _conv1d_ref(h.astype(jnp.bfloat16), w2.astype(jnp.bfloat16), b2,
                    dilation, p)[:, :, :L]
    h = jnp.maximum(h, 0.0)                                  # relu2 (+dropout=id)
    res = jnp.einsum("oc,ncl->nol", wd.astype(jnp.bfloat16), xb,
                     preferred_element_type=jnp.float32) + bd[None, :, None]
    return jnp.maximum(h + res, 0.0)


# ---------------------------------- main -----------------------------------

if __name__ == "__main__":
    N, C_IN, C_OUT = 2, 16, 32
    KSIZE, DILATION = 3, 2                 # stride=1 (standard TCN usage)

    key = jax.random.PRNGKey(0)
    kx, kp = jax.random.split(key)
    w1, b1, w2, b2, wd, bd = make_params(kp, C_IN, C_OUT, KSIZE)

    # Case 1: small L with a small explicit tile -> 3 time tiles, exercises
    # the cross-tile causal halo and the first-tile pl.when zeroing path.
    L1 = 300
    x1 = jax.random.normal(kx, (N, C_IN, L1), jnp.float32)
    out1 = jax.block_until_ready(
        temporal_block(x1, w1, b1, w2, b2, wd, bd,
                       kernel_size=KSIZE, dilation=DILATION, time_tile=128))
    ref1 = temporal_block_ref(x1, w1, b1, w2, b2, wd, bd,
                              kernel_size=KSIZE, dilation=DILATION)
    np.testing.assert_allclose(np.asarray(out1), np.asarray(ref1),
                               rtol=1e-2, atol=1e-2)

    # Case 2: default (larger) time tile of 512, L not a multiple of the tile
    # -> 3 time tiles plus right padding, still small/fast.
    L2 = 1100
    x2 = jax.random.normal(kx, (N, C_IN, L2), jnp.float32)
    out2 = jax.block_until_ready(
        temporal_block(x2, w1, b1, w2, b2, wd, bd,
                       kernel_size=KSIZE, dilation=DILATION))
    ref2 = temporal_block_ref(x2, w1, b1, w2, b2, wd, bd,
                              kernel_size=KSIZE, dilation=DILATION)
    np.testing.assert_allclose(np.asarray(out2), np.asarray(ref2),
                               rtol=1e-2, atol=1e-2)

    print("KERNEL_OK")
</pallas_src>

<mosaic_0001>
module attributes {stable_mosaic.version = 11 : i64} {
  func.func @_temporal_block_kernel(%arg0: i32, %arg1: i32, %arg2: memref<1x16x128xbf16, #tpu.memory_space<vmem>>, %arg3: memref<1x1x16x128xbf16, #tpu.memory_space<vmem>>, %arg4: memref<3x32x16xbf16, #tpu.memory_space<vmem>>, %arg5: memref<32x1xf32, #tpu.memory_space<vmem>>, %arg6: memref<3x32x32xbf16, #tpu.memory_space<vmem>>, %arg7: memref<32x1xf32, #tpu.memory_space<vmem>>, %arg8: memref<32x16xbf16, #tpu.memory_space<vmem>>, %arg9: memref<32x1xf32, #tpu.memory_space<vmem>>, %arg10: memref<1x32x128xf32, #tpu.memory_space<vmem>>, %arg11: memref<16x256xbf16, #tpu.memory_space<vmem>>, %arg12: memref<32x132xbf16, #tpu.memory_space<vmem>>) attributes {dimension_semantics = [#tpu.dimension_semantics<parallel>, #tpu.dimension_semantics<parallel>], iteration_bounds = array<i64: 2, 3>, scalar_prefetch = 0 : i64, scratch_operands = 2 : i64, tpu.core_type = #tpu.core_type<tc>, window_params = [{transform_indices = @transform_0, window_bounds = array<i64: 1, 16, 128>}, {transform_indices = @transform_1, window_bounds = array<i64: 1, 1, 16, 128>}, {pipeline_mode = #tpu.pipeline_mode<synchronous>, transform_indices = @transform_2, window_bounds = array<i64: 3, 32, 16>}, {pipeline_mode = #tpu.pipeline_mode<synchronous>, transform_indices = @transform_3, window_bounds = array<i64: 32, 1>}, {pipeline_mode = #tpu.pipeline_mode<synchronous>, transform_indices = @transform_4, window_bounds = array<i64: 3, 32, 32>}, {pipeline_mode = #tpu.pipeline_mode<synchronous>, transform_indices = @transform_5, window_bounds = array<i64: 32, 1>}, {pipeline_mode = #tpu.pipeline_mode<synchronous>, transform_indices = @transform_6, window_bounds = array<i64: 32, 16>}, {pipeline_mode = #tpu.pipeline_mode<synchronous>, transform_indices = @transform_7, window_bounds = array<i64: 32, 1>}, {transform_indices = @transform_8, window_bounds = array<i64: 1, 32, 128>}]} {
    %c0 = arith.constant 0 : index
    %c0_0 = arith.constant 0 : index
    %c0_1 = arith.constant 0 : index
    %c0_2 = arith.constant 0 : index
    %0 = vector.load %arg3[%c0, %c0_0, %c0_1, %c0_2] : memref<1x1x16x128xbf16, #tpu.memory_space<vmem>>, vector<1x1x16x128xbf16>
    %1 = vector.shape_cast %0 : vector<1x1x16x128xbf16> to vector<16x128xbf16>
    %c0_3 = arith.constant 0 : index
    %c0_4 = arith.constant 0 : index
    %2 = vector.load %arg11[%c0_3, %c0_4] : memref<16x256xbf16, #tpu.memory_space<vmem>>, vector<16x128xbf16>
    tpu.vector_store %arg11[%c0_3, %c0_4], %1 {strides = array<i32>} : memref<16x256xbf16, #tpu.memory_space<vmem>>, vector<16x128xbf16>,
    %c0_5 = arith.constant 0 : index
    %c0_6 = arith.constant 0 : index
    %c0_7 = arith.constant 0 : index
    %3 = vector.load %arg2[%c0_5, %c0_6, %c0_7] : memref<1x16x128xbf16, #tpu.memory_space<vmem>>, vector<1x16x128xbf16>
    %4 = vector.shape_cast %3 : vector<1x16x128xbf16> to vector<16x128xbf16>
    %c0_8 = arith.constant 0 : index
    %c128 = arith.constant 128 : index
    %5 = vector.load %arg11[%c0_8, %c128] : memref<16x256xbf16, #tpu.memory_space<vmem>>, vector<16x128xbf16>
    tpu.vector_store %arg11[%c0_8, %c128], %4 {strides = array<i32>} : memref<16x256xbf16, #tpu.memory_space<vmem>>, vector<16x128xbf16>,
    %c0_9 = arith.constant 0 : index
    %c0_10 = arith.constant 0 : index
    %c0_11 = arith.constant 0 : index
    %6 = vector.load %arg4[%c0_9, %c0_10, %c0_11] : memref<3x32x16xbf16, #tpu.memory_space<vmem>>, vector<1x32x16xbf16>
    %7 = vector.shape_cast %6 : vector<1x32x16xbf16> to vector<32x16xbf16>
    %c0_12 = arith.constant 0 : index
    %c120 = arith.constant 120 : index
    %8 = vector.load %arg11[%c0_12, %c120] : memref<16x256xbf16, #tpu.memory_space<vmem>>, vector<16x132xbf16>
    %cst = arith.constant dense<0.000000e+00> : vector<32x132xf32>
    %9 = tpu.matmul %7, %8, %cst {dimension_numbers = #tpu.dot_dimension_numbers<[1], [0], [0], [1], [0, 0, 1, 1], [], []>} : vector<32x16xbf16>, vector<16x132xbf16>, vector<32x132xf32> -> vector<32x132xf32>
    %c1 = arith.constant 1 : index
    %c0_13 = arith.constant 0 : index
    %c0_14 = arith.constant 0 : index
    %10 = vector.load %arg4[%c1, %c0_13, %c0_14] : memref<3x32x16xbf16, #tpu.memory_space<vmem>>, vector<1x32x16xbf16>
    %11 = vector.shape_cast %10 : vector<1x32x16xbf16> to vector<32x16xbf16>
    %c0_15 = arith.constant 0 : index
    %c122 = arith.constant 122 : index
    %12 = vector.load %arg11[%c0_15, %c122] : memref<16x256xbf16, #tpu.memory_space<vmem>>, vector<16x132xbf16>
    %cst_16 = arith.constant dense<0.000000e+00> : vector<32x132xf32>
    %13 = tpu.matmul %11, %12, %cst_16 {dimension_numbers = #tpu.dot_dimension_numbers<[1], [0], [0], [1], [0, 0, 1, 1], [], []>} : vector<32x16xbf16>, vector<16x132xbf16>, vector<32x132xf32> -> vector<32x132xf32>
    %14 = arith.addf %9, %13 : vector<32x132xf32>
    %c2 = arith.constant 2 : index
    %c0_17 = arith.constant 0 : index
    %c0_18 = arith.constant 0 : index
    %15 = vector.load %arg4[%c2, %c0_17, %c0_18] : memref<3x32x16xbf16, #tpu.memory_space<vmem>>, vector<1x32x16xbf16>
    %16 = vector.shape_cast %15 : vector<1x32x16xbf16> to vector<32x16xbf16>
    %c0_19 = arith.constant 0 : index
    %c124 = arith.constant 124 : index
    %17 = vector.load %arg11[%c0_19, %c124] : memref<16x256xbf16, #tpu.memory_space<vmem>>, vector<16x132xbf16>
    %cst_20 = arith.constant dense<0.000000e+00> : vector<32x132xf32>
    %18 = tpu.matmul %16, %17, %cst_20 {dimension_numbers = #tpu.dot_dimension_numbers<[1], [0], [0], [1], [0, 0, 1, 1], [], []>} : vector<32x16xbf16>, vector<16x132xbf16>, vector<32x132xf32> -> vector<32x132xf32>
    %19 = arith.addf %14, %18 : vector<32x132xf32>
    %c0_21 = arith.constant 0 : index
    %c0_22 = arith.constant 0 : index
    %20 = vector.load %arg5[%c0_21, %c0_22] : memref<32x1xf32, #tpu.memory_space<vmem>>, vector<32x1xf32>
    %21 = vector.broadcast %20 : vector<32x1xf32> to vector<32x132xf32>
    %22 = arith.addf %19, %21 : vector<32x132xf32>
    %cst_23 = arith.constant 0.000000e+00 : f32
    %23 = vector.broadcast %cst_23 : f32 to vector<32x132xf32>
    %24 = arith.maximumf %22, %23 : vector<32x132xf32>
    %25 = arith.truncf %24 : vector<32x132xf32> to vector<32x132xbf16>
    %c0_24 = arith.constant 0 : index
    %c0_25 = arith.constant 0 : index
    %26 = vector.load %arg12[%c0_24, %c0_25] : memref<32x132xbf16, #tpu.memory_space<vmem>>, vector<32x132xbf16>
    tpu.vector_store %arg12[%c0_24, %c0_25], %25 {strides = array<i32>} : memref<32x132xbf16, #tpu.memory_space<vmem>>, vector<32x132xbf16>,
    %c0_i32 = arith.constant 0 : i32
    %27 = arith.cmpi eq, %arg1, %c0_i32 : i32
    %28 = arith.extui %27 : i1 to i32
    %c0_i32_26 = arith.constant 0 : i32
    %29 = arith.cmpi ne, %28, %c0_i32_26 : i32
    scf.if %29 {
      %cst_59 = arith.constant 0.000000e+00 : bf16
      %62 = vector.broadcast %cst_59 : bf16 to vector<32x4xbf16>
      %c0_60 = arith.constant 0 : index
      %c0_61 = arith.constant 0 : index
      %63 = vector.load %arg12[%c0_60, %c0_61] : memref<32x132xbf16, #tpu.memory_space<vmem>>, vector<32x4xbf16>
      tpu.vector_store %arg12[%c0_60, %c0_61], %62 {strides = array<i32>} : memref<32x132xbf16, #tpu.memory_space<vmem>>, vector<32x4xbf16>,
    } else {
    }
    %c0_27 = arith.constant 0 : index
    %c0_28 = arith.constant 0 : index
    %c0_29 = arith.constant 0 : index
    %30 = vector.load %arg6[%c0_27, %c0_28, %c0_29] : memref<3x32x32xbf16, #tpu.memory_space<vmem>>, vector<1x32x32xbf16>
    %31 = vector.shape_cast %30 : vector<1x32x32xbf16> to vector<32x32xbf16>
    %c0_30 = arith.constant 0 : index
    %c0_31 = arith.constant 0 : index
    %32 = vector.load %arg12[%c0_30, %c0_31] : memref<32x132xbf16, #tpu.memory_space<vmem>>, vector<32x128xbf16>
    %cst_32 = arith.constant dense<0.000000e+00> : vector<32x128xf32>
    %33 = tpu.matmul %31, %32, %cst_32 {dimension_numbers = #tpu.dot_dimension_numbers<[1], [0], [0], [1], [0, 0, 1, 1], [], []>} : vector<32x32xbf16>, vector<32x128xbf16>, vector<32x128xf32> -> vector<32x128xf32>
    %c1_33 = arith.constant 1 : index
    %c0_34 = arith.constant 0 : index
    %c0_35 = arith.constant 0 : index
    %34 = vector.load %arg6[%c1_33, %c0_34, %c0_35] : memref<3x32x32xbf16, #tpu.memory_space<vmem>>, vector<1x32x32xbf16>
    %35 = vector.shape_cast %34 : vector<1x32x32xbf16> to vector<32x32xbf16>
    %c0_36 = arith.constant 0 : index
    %c2_37 = arith.constant 2 : index
    %36 = vector.load %arg12[%c0_36, %c2_37] : memref<32x132xbf16, #tpu.memory_space<vmem>>, vector<32x128xbf16>
    %cst_38 = arith.constant dense<0.000000e+00> : vector<32x128xf32>
    %37 = tpu.matmul %35, %36, %cst_38 {dimension_numbers = #tpu.dot_dimension_numbers<[1], [0], [0], [1], [0, 0, 1, 1], [], []>} : vector<32x32xbf16>, vector<32x128xbf16>, vector<32x128xf32> -> vector<32x128xf32>
    %38 = arith.addf %33, %37 : vector<32x128xf32>
    %c2_39 = arith.constant 2 : index
    %c0_40 = arith.constant 0 : index
    %c0_41 = arith.constant 0 : index
    %39 = vector.load %arg6[%c2_39, %c0_40, %c0_41] : memref<3x32x32xbf16, #tpu.memory_space<vmem>>, vector<1x32x32xbf16>
    %40 = vector.shape_cast %39 : vector<1x32x32xbf16> to vector<32x32xbf16>
    %c0_42 = arith.constant 0 : index
    %c4 = arith.constant 4 : index
    %41 = vector.load %arg12[%c0_42, %c4] : memref<32x132xbf16, #tpu.memory_space<vmem>>, vector<32x128xbf16>
    %cst_43 = arith.constant dense<0.000000e+00> : vector<32x128xf32>
    %42 = tpu.matmul %40, %41, %cst_43 {dimension_numbers = #tpu.dot_dimension_numbers<[1], [0], [0], [1], [0, 0, 1, 1], [], []>} : vector<32x32xbf16>, vector<32x128xbf16>, vector<32x128xf32> -> vector<32x128xf32>
    %43 = arith.addf %38, %42 : vector<32x128xf32>
    %c0_44 = arith.constant 0 : index
    %c0_45 = arith.constant 0 : index
    %44 = vector.load %arg7[%c0_44, %c0_45] : memref<32x1xf32, #tpu.memory_space<vmem>>, vector<32x1xf32>
    %45 = vector.broadcast %44 : vector<32x1xf32> to vector<32x128xf32>
    %46 = arith.addf %43, %45 : vector<32x128xf32>
    %cst_46 = arith.constant 0.000000e+00 : f32
    %47 = vector.broadcast %cst_46 : f32 to vector<32x128xf32>
    %48 = arith.maximumf %46, %47 : vector<32x128xf32>
    %c0_47 = arith.constant 0 : index
    %c0_48 = arith.constant 0 : index
    %49 = vector.load %arg8[%c0_47, %c0_48] : memref<32x16xbf16, #tpu.memory_space<vmem>>, vector<32x16xbf16>
    %c0_49 = arith.constant 0 : index
    %c0_50 = arith.constant 0 : index
    %c0_51 = arith.constant 0 : index
    %50 = vector.load %arg2[%c0_49, %c0_50, %c0_51] : memref<1x16x128xbf16, #tpu.memory_space<vmem>>, vector<1x16x128xbf16>
    %51 = vector.shape_cast %50 : vector<1x16x128xbf16> to vector<16x128xbf16>
    %cst_52 = arith.constant dense<0.000000e+00> : vector<32x128xf32>
    %52 = tpu.matmul %49, %51, %cst_52 {dimension_numbers = #tpu.dot_dimension_numbers<[1], [0], [0], [1], [0, 0, 1, 1], [], []>} : vector<32x16xbf16>, vector<16x128xbf16>, vector<32x128xf32> -> vector<32x128xf32>
    %c0_53 = arith.constant 0 : index
    %c0_54 = arith.constant 0 : index
    %53 = vector.load %arg9[%c0_53, %c0_54] : memref<32x1xf32, #tpu.memory_space<vmem>>, vector<32x1xf32>
    %54 = vector.broadcast %53 : vector<32x1xf32> to vector<32x128xf32>
    %55 = arith.addf %52, %54 : vector<32x128xf32>
    %56 = arith.addf %48, %55 : vector<32x128xf32>
    %cst_55 = arith.constant 0.000000e+00 : f32
    %57 = vector.broadcast %cst_55 : f32 to vector<32x128xf32>
    %58 = arith.maximumf %56, %57 : vector<32x128xf32>
    %c0_56 = arith.constant 0 : index
    %c0_57 = arith.constant 0 : index
    %c0_58 = arith.constant 0 : index
    %59 = vector.load %arg10[%c0_56, %c0_57, %c0_58] : memref<1x32x128xf32, #tpu.memory_space<vmem>>, vector<1x32x128xf32>
    %60 = vector.shape_cast %59 : vector<1x32x128xf32> to vector<32x128xf32>
    %61 = vector.shape_cast %58 : vector<32x128xf32> to vector<1x32x128xf32>
    tpu.vector_store %arg10[%c0_56, %c0_57, %c0_58], %61 {strides = array<i32>} : memref<1x32x128xf32, #tpu.memory_space<vmem>>, vector<1x32x128xf32>,
    return
  }
  func.func @transform_0(%arg0: i32, %arg1: i32) -> (i32, i32, i32) {
    %c0_i32 = arith.constant 0 : i32
    %c0_i32_0 = arith.constant 0 : i32
    return %arg0, %c0_i32, %arg1 : i32, i32, i32
  }
  func.func @transform_1(%arg0: i32, %arg1: i32) -> (i32, i32, i32, i32) {
    %c0_i32 = arith.constant 0 : i32
    %c0_i32_0 = arith.constant 0 : i32
    %c0_i32_1 = arith.constant 0 : i32
    return %arg0, %arg1, %c0_i32, %c0_i32_0 : i32, i32, i32, i32
  }
  func.func @transform_2(%arg0: i32, %arg1: i32) -> (i32, i32, i32) {
    %c0_i32 = arith.constant 0 : i32
    %c0_i32_0 = arith.constant 0 : i32
    %c0_i32_1 = arith.constant 0 : i32
    %c0_i32_2 = arith.constant 0 : i32
    return %c0_i32, %c0_i32_0, %c0_i32_1 : i32, i32, i32
  }
  func.func @transform_3(%arg0: i32, %arg1: i32) -> (i32, i32) {
    %c0_i32 = arith.constant 0 : i32
    %c0_i32_0 = arith.constant 0 : i32
    %c0_i32_1 = arith.constant 0 : i32
    return %c0_i32, %c0_i32_0 : i32, i32
  }
  func.func @transform_4(%arg0: i32, %arg1: i32) -> (i32, i32, i32) {
    %c0_i32 = arith.constant 0 : i32
    %c0_i32_0 = arith.constant 0 : i32
    %c0_i32_1 = arith.constant 0 : i32
    %c0_i32_2 = arith.constant 0 : i32
    return %c0_i32, %c0_i32_0, %c0_i32_1 : i32, i32, i32
  }
  func.func @transform_5(%arg0: i32, %arg1: i32) -> (i32, i32) {
    %c0_i32 = arith.constant 0 : i32
    %c0_i32_0 = arith.constant 0 : i32
    %c0_i32_1 = arith.constant 0 : i32
    return %c0_i32, %c0_i32_0 : i32, i32
  }
  func.func @transform_6(%arg0: i32, %arg1: i32) -> (i32, i32) {
    %c0_i32 = arith.constant 0 : i32
    %c0_i32_0 = arith.constant 0 : i32
    %c0_i32_1 = arith.constant 0 : i32
    return %c0_i32, %c0_i32_0 : i32, i32
  }
  func.func @transform_7(%arg0: i32, %arg1: i32) -> (i32, i32) {
    %c0_i32 = arith.constant 0 : i32
    %c0_i32_0 = arith.constant 0 : i32
    %c0_i32_1 = arith.constant 0 : i32
    return %c0_i32, %c0_i32_0 : i32, i32
  }
  func.func @transform_8(%arg0: i32, %arg1: i32) -> (i32, i32, i32) {
    %c0_i32 = arith.constant 0 : i32
    %c0_i32_0 = arith.constant 0 : i32
    return %arg0, %c0_i32, %arg1 : i32, i32, i32
  }
}

</mosaic_0001>

<llo_original>
// kernel: tpu_custom_call.1
$region0: #{tpu_custom_call.1}
  #allocation0 [shape = 'u32[]', space=smem, size = 0x4, offset = 0x4, fixed_abs, tag = 'smem constant byte address 0x4 - core index']
  #allocation1 [shape = 'u32[144,128]{1,0:T(1,128)}', space=vmem, size = 0x12000, scoped, tag = 'internal scratch']
  #allocation2 [shape = 'bf16[16,256]{1,0:T(8,128)(2,1)}', space=vmem, size = 0x2000, scoped, tag = 'scratch operand']
  #allocation3 [shape = 'bf16[32,132]{1,0:T(8,128)(2,1)}', space=vmem, size = 0x4000, scoped, tag = 'scratch operand']
  %s0 = inlined_call_operand.vmem [shape: bf16[2,16,384], index: 0, kind: input, shape index: {}]
  %s1 = inlined_call_operand.vmem [shape: bf16[2,3,16,128], index: 1, kind: input, shape index: {}]
  %s2 = inlined_call_operand.vmem [shape: bf16[3,32,16], index: 2, kind: input, shape index: {}]
  %s3 = inlined_call_operand.vmem [shape: f32[32,1], index: 3, kind: input, shape index: {}]
  %s4 = inlined_call_operand.vmem [shape: bf16[3,32,32], index: 4, kind: input, shape index: {}]
  %s5 = inlined_call_operand.vmem [shape: f32[32,1], index: 5, kind: input, shape index: {}]
  %s6 = inlined_call_operand.vmem [shape: bf16[32,16], index: 6, kind: input, shape index: {}]
  %s7 = inlined_call_operand.vmem [shape: f32[32,1], index: 7, kind: input, shape index: {}]
  %s8 = inlined_call_operand.hbm [shape: f32[2,32,384], index: 8, kind: output, shape index: {}]
  %s9 = sld [smem:[#allocation0]]
  $region110: #{tpu_custom_call.1} parent=0
    _
  %s11 = ssub.s32 1, %s9
  %s12 = scalar_select 0, %s11, %s9
  $region1: #{tpu_custom_call.1} parent=0
    #allocation4 [shape = 'u8[8192]{0}', space=vmem, size = 0x2000, scoped, tag = 'input window, operand 0']
    #allocation5 [shape = 'u8[32768]{0}', space=vmem, size = 0x8000, scoped, tag = 'output window, operand 0']
    #allocation6 [shape = 's32[2]{0}', space=sflag, size = 0x8, scoped, tag = 'scoped memory for tpu_custom_call.1']
    %13 = vsyncpa [#allocation6], 0
    %s14 = scalar_lea.sflag [#allocation6], 1
    %15 = vsyncpa %s14, 0
    loop: start=0, step=1, limit=8
    $region2: #{tpu_custom_call.1} parent=1 // loop_pre_header
      _
    $region3: #{tpu_custom_call.1} parent=1 // loop_header
      %s17 = sphi 0, %s21
      %p18 = scmp.ge.s32.totalorder %s17, 8
      %s24 = sphi 0, %s36
      %s25 = sphi 0, %s32
      %s26 = sphi 0, %s24
      %s27 = sphi 0, %s25
      %s28 = sphi 0, %s26
      %s29 = sphi 0, %s27
      %s41 = sphi 0, %s43
      %s44 = sphi 0, %s41
      %s45 = sphi 0, %s44
      %s61 = sphi 0, %s45
      %s69 = sphi 0, %s71
      %s72 = sphi 0, %s69
      %s73 = sphi 0, %s72
      %s89 = sphi 0, %s73
      %s93 = sphi 0, %s93
      %s95 = sphi 0, %s93
      %s96 = sphi 0, %s95
      %s110 = sphi 0, %s96
      %s114 = sphi 0, %s114
      %s116 = sphi 0, %s114
      %s117 = sphi 0, %s116
      %s131 = sphi 0, %s117
      %s135 = sphi 0, %s135
      %s137 = sphi 0, %s135
      %s138 = sphi 0, %s137
      %s152 = sphi 0, %s138
      %s156 = sphi 0, %s156
      %s158 = sphi 0, %s156
      %s159 = sphi 0, %s158
      %s173 = sphi 0, %s159
      %s177 = sphi 0, %s177
      %s179 = sphi 0, %s177
      %s180 = sphi 0, %s179
      %s194 = sphi 0, %s180
      %s198 = sphi 0, %s198
      %s200 = sphi 0, %s198
      %s201 = sphi 0, %s200
      %s215 = sphi 0, %s201
      %s223 = sphi 0, %s225
      %s226 = sphi 0, %s223
      %s227 = sphi 0, %s226
      %s243 = sphi 0, %s227
    $region4: #{tpu_custom_call.1} parent=1 // loop_header_branch
      %20 = sbr.rel (%p18) target = $region8
    $region5: #{tpu_custom_call.1} parent=1 // loop_body
      %s22 = ssub.s32 %s17, 1
      %s23 = ssub.s32 %s17, 2
      %s30 = sadd.s32 1, %s25
      %p31 = scmp.ge.s32.totalorder %s30, 3
      %s32 = scalar_select %p31, 0, %s30
      %s33 = sadd.s32 1, %s24
      %s34 = scalar_select %p31, %s33, %s24
      %p35 = scmp.ge.s32.totalorder %s34, 2
      %s36 = scalar_select %p35, 0, %s34
      %s37 = ssub.s32 %s24, %s36
      %s38 = ssub.s32 %s25, %s32
      %s39 = sor.u32 %s37, %s38
      %p40 = scmp.eq.s32.totalorder %s39, 0
      %s42 = sadd.s32 %s41, 1
      %s43 = scalar_select %p40, %s41, %s42
      %p46 = pneg %p40
      %p47 = scmp.eq.s32.totalorder %s17, 5
      %p48 = por %p46, %p47
      %p49 = scmp.ne.s32.totalorder %s41, %s44
      %p50 = scmp.eq.s32.totalorder %s17, 0
      %p51 = por %p49, %p50
      %p52 = scmp.ne.s32.totalorder %s41, %s44
      %p53 = scmp.eq.s32.totalorder %s22, 5
      %p54 = por %p52, %p53
      %p55 = scmp.ne.s32.totalorder %s44, %s45
      %p56 = scmp.eq.s32.totalorder %s22, 0
      %p57 = por %p55, %p56
      %p58 = scmp.ne.s32.totalorder %s44, %s45
      %p59 = scmp.eq.s32.totalorder %s23, 5
      %p60 = por %p58, %p59
      %p62 = scmp.ne.s32.totalorder %s45, %s61
      %p63 = scmp.eq.s32.totalorder %s23, 0
      %p64 = por %p62, %p63
      %s65 = ssub.s32 %s24, %s36
      %s66 = ssub.s32 %s25, %s32
      %s67 = sor.u32 %s65, %s66
      %p68 = scmp.eq.s32.totalorder %s67, 0
      %s70 = sadd.s32 %s69, 1
      %s71 = scalar_select %p68, %s69, %s70
      %p74 = pneg %p68
      %p75 = scmp.eq.s32.totalorder %s17, 5
      %p76 = por %p74, %p75
      %p77 = scmp.ne.s32.totalorder %s69, %s72
      %p78 = scmp.eq.s32.totalorder %s17, 0
      %p79 = por %p77, %p78
      %p80 = scmp.ne.s32.totalorder %s69, %s72
      %p81 = scmp.eq.s32.totalorder %s22, 5
      %p82 = por %p80, %p81
      %p83 = scmp.ne.s32.totalorder %s72, %s73
      %p84 = scmp.eq.s32.totalorder %s22, 0
      %p85 = por %p83, %p84
      %p86 = scmp.ne.s32.totalorder %s72, %s73
      %p87 = scmp.eq.s32.totalorder %s23, 5
      %p88 = por %p86, %p87
      %p90 = scmp.ne.s32.totalorder %s73, %s89
      %p91 = scmp.eq.s32.totalorder %s23, 0
      %p92 = por %p90, %p91
      %s94 = sadd.s32 %s93, 1
      %p97 = scmp.eq.s32.totalorder %s17, 5
      %p98 = scmp.ne.s32.totalorder %s93, %s95
      %p99 = scmp.eq.s32.totalorder %s17, 0
      %p100 = por %p98, %p99
      %p101 = scmp.ne.s32.totalorder %s93, %s95
      %p102 = scmp.eq.s32.totalorder %s22, 5
      %p103 = por %p101, %p102
      %p104 = scmp.ne.s32.totalorder %s95, %s96
      %p105 = scmp.eq.s32.totalorder %s22, 0
      %p106 = por %p104, %p105
      %p107 = scmp.ne.s32.totalorder %s95, %s96
      %p108 = scmp.eq.s32.totalorder %s23, 5
      %p109 = por %p107, %p108
      %p111 = scmp.ne.s32.totalorder %s96, %s110
      %p112 = scmp.eq.s32.totalorder %s23, 0
      %p113 = por %p111, %p112
      %s115 = sadd.s32 %s114, 1
      %p118 = scmp.eq.s32.totalorder %s17, 5
      %p119 = scmp.ne.s32.totalorder %s114, %s116
      %p120 = scmp.eq.s32.totalorder %s17, 0
      %p121 = por %p119, %p120
      %p122 = scmp.ne.s32.totalorder %s114, %s116
      %p123 = scmp.eq.s32.totalorder %s22, 5
      %p124 = por %p122, %p123
      %p125 = scmp.ne.s32.totalorder %s116, %s117
      %p126 = scmp.eq.s32.totalorder %s22, 0
      %p127 = por %p125, %p126
      %p128 = scmp.ne.s32.totalorder %s116, %s117
      %p129 = scmp.eq.s32.totalorder %s23, 5
      %p130 = por %p128, %p129
      %p132 = scmp.ne.s32.totalorder %s117, %s131
      %p133 = scmp.eq.s32.totalorder %s23, 0
      %p134 = por %p132, %p133
      %s136 = sadd.s32 %s135, 1
      %p139 = scmp.eq.s32.totalorder %s17, 5
      %p140 = scmp.ne.s32.totalorder %s135, %s137
      %p141 = scmp.eq.s32.totalorder %s17, 0
      %p142 = por %p140, %p141
      %p143 = scmp.ne.s32.totalorder %s135, %s137
      %p144 = scmp.eq.s32.totalorder %s22, 5
      %p145 = por %p143, %p144
      %p146 = scmp.ne.s32.totalorder %s137, %s138
      %p147 = scmp.eq.s32.totalorder %s22, 0
      %p148 = por %p146, %p147
      %p149 = scmp.ne.s32.totalorder %s137, %s138
      %p150 = scmp.eq.s32.totalorder %s23, 5
      %p151 = por %p149, %p150
      %p153 = scmp.ne.s32.totalorder %s138, %s152
      %p154 = scmp.eq.s32.totalorder %s23, 0
      %p155 = por %p153, %p154
      %s157 = sadd.s32 %s156, 1
      %p160 = scmp.eq.s32.totalorder %s17, 5
      %p161 = scmp.ne.s32.totalorder %s156, %s158
      %p162 = scmp.eq.s32.totalorder %s17, 0
      %p163 = por %p161, %p162
      %p164 = scmp.ne.s32.totalorder %s156, %s158
      %p165 = scmp.eq.s32.totalorder %s22, 5
      %p166 = por %p164, %p165
      %p167 = scmp.ne.s32.totalorder %s158, %s159
      %p168 = scmp.eq.s32.totalorder %s22, 0
      %p169 = por %p167, %p168
      %p170 = scmp.ne.s32.totalorder %s158, %s159
      %p171 = scmp.eq.s32.totalorder %s23, 5
      %p172 = por %p170, %p171
      %p174 = scmp.ne.s32.totalorder %s159, %s173
      %p175 = scmp.eq.s32.totalorder %s23, 0
      %p176 = por %p174, %p175
      %s178 = sadd.s32 %s177, 1
      %p181 = scmp.eq.s32.totalorder %s17, 5
      %p182 = scmp.ne.s32.totalorder %s177, %s179
      %p183 = scmp.eq.s32.totalorder %s17, 0
      %p184 = por %p182, %p183
      %p185 = scmp.ne.s32.totalorder %s177, %s179
      %p186 = scmp.eq.s32.totalorder %s22, 5
      %p187 = por %p185, %p186
      %p188 = scmp.ne.s32.totalorder %s179, %s180
      %p189 = scmp.eq.s32.totalorder %s22, 0
      %p190 = por %p188, %p189
      %p191 = scmp.ne.s32.totalorder %s179, %s180
      %p192 = scmp.eq.s32.totalorder %s23, 5
      %p193 = por %p191, %p192
      %p195 = scmp.ne.s32.totalorder %s180, %s194
      %p196 = scmp.eq.s32.totalorder %s23, 0
      %p197 = por %p195, %p196
      %s199 = sadd.s32 %s198, 1
      %p202 = scmp.eq.s32.totalorder %s17, 5
      %p203 = scmp.ne.s32.totalorder %s198, %s200
      %p204 = scmp.eq.s32.totalorder %s17, 0
      %p205 = por %p203, %p204
      %p206 = scmp.ne.s32.totalorder %s198, %s200
      %p207 = scmp.eq.s32.totalorder %s22, 5
      %p208 = por %p206, %p207
      %p209 = scmp.ne.s32.totalorder %s200, %s201
      %p210 = scmp.eq.s32.totalorder %s22, 0
      %p211 = por %p209, %p210
      %p212 = scmp.ne.s32.totalorder %s200, %s201
      %p213 = scmp.eq.s32.totalorder %s23, 5
      %p214 = por %p212, %p213
      %p216 = scmp.ne.s32.totalorder %s201, %s215
      %p217 = scmp.eq.s32.totalorder %s23, 0
      %p218 = por %p216, %p217
      %s219 = ssub.s32 %s24, %s36
      %s220 = ssub.s32 %s25, %s32
      %s221 = sor.u32 %s219, %s220
      %p222 = scmp.eq.s32.totalorder %s221, 0
      %s224 = sadd.s32 %s223, 1
      %s225 = scalar_select %p222, %s223, %s224
      %p228 = pneg %p222
      %p229 = scmp.eq.s32.totalorder %s17, 5
      %p230 = por %p228, %p229
      %p231 = scmp.ne.s32.totalorder %s223, %s226
      %p232 = scmp.eq.s32.totalorder %s17, 0
      %p233 = por %p231, %p232
      %p234 = scmp.ne.s32.totalorder %s223, %s226
      %p235 = scmp.eq.s32.totalorder %s22, 5
      %p236 = por %p234, %p235
      %p237 = scmp.ne.s32.totalorder %s226, %s227
      %p238 = scmp.eq.s32.totalorder %s22, 0
      %p239 = por %p237, %p238
      %p240 = scmp.ne.s32.totalorder %s226, %s227
      %p241 = scmp.eq.s32.totalorder %s23, 5
      %p242 = por %p240, %p241
      %p244 = scmp.ne.s32.totalorder %s227, %s243
      %p245 = scmp.eq.s32.totalorder %s23, 0
      %p246 = por %p244, %p245
      %p247 = scmp.le.s32.totalorder 1, %s17
      %p248 = scmp.lt.s32.totalorder %s17, 7
      %p249 = pnand %p247, %p248
      %p250 = pneg %p249
      // Predicated region
      $region9: #{tpu_custom_call.1} parent=5 // pred_check
        _
      $region10: #{tpu_custom_call.1} parent=5 // pred_check_branch
        %252 = sbr.rel (%p249) target = $region12
      $region11: #{tpu_custom_call.1} parent=5 // pred_region
        %s253 = ssub.s32 %s17, 1
        // Predicated region
        $region13: #{tpu_custom_call.1} parent=11 // pred_check
          %p254 = pneg %p106
        $region14: #{tpu_custom_call.1} parent=11 // pred_check_branch
          %256 = sbr.rel (%p254) target = $region16
        $region15: #{tpu_custom_call.1} parent=11 // pred_region
          _
        $region16: #{tpu_custom_call.1} parent=11 // pred_fallthru
          _
        // Predicated region
        $region17: #{tpu_custom_call.1} parent=11 // pred_check
          %p257 = pneg %p127
        $region18: #{tpu_custom_call.1} parent=11 // pred_check_branch
          %259 = sbr.rel (%p257) target = $region20
        $region19: #{tpu_custom_call.1} parent=11 // pred_region
          _
        $region20: #{tpu_custom_call.1} parent=11 // pred_fallthru
          _
        // Predicated region
        $region21: #{tpu_custom_call.1} parent=11 // pred_check
          %p260 = pneg %p148
        $region22: #{tpu_custom_call.1} parent=11 // pred_check_branch
          %262 = sbr.rel (%p260) target = $region24
        $region23: #{tpu_custom_call.1} parent=11 // pred_region
          _
        $region24: #{tpu_custom_call.1} parent=11 // pred_fallthru
          _
        // Predicated region
        $region25: #{tpu_custom_call.1} parent=11 // pred_check
          %p263 = pneg %p169
        $region26: #{tpu_custom_call.1} parent=11 // pred_check_branch
          %265 = sbr.rel (%p263) target = $region28
        $region27: #{tpu_custom_call.1} parent=11 // pred_region
          _
        $region28: #{tpu_custom_call.1} parent=11 // pred_fallthru
          _
        // Predicated region
        $region29: #{tpu_custom_call.1} parent=11 // pred_check
          %p266 = pneg %p190
        $region30: #{tpu_custom_call.1} parent=11 // pred_check_branch
          %268 = sbr.rel (%p266) target = $region32
        $region31: #{tpu_custom_call.1} parent=11 // pred_region
          _
        $region32: #{tpu_custom_call.1} parent=11 // pred_fallthru
          _
        // Predicated region
        $region33: #{tpu_custom_call.1} parent=11 // pred_check
          %p269 = pneg %p211
        $region34: #{tpu_custom_call.1} parent=11 // pred_check_branch
          %271 = sbr.rel (%p269) target = $region36
        $region35: #{tpu_custom_call.1} parent=11 // pred_region
          _
        $region36: #{tpu_custom_call.1} parent=11 // pred_fallthru
          _
      $region12: #{tpu_custom_call.1} parent=5 // pred_fallthru
        _
      %p272 = scmp.lt.s32.totalorder %s17, 6
      // Predicated region
      $region37: #{tpu_custom_call.1} parent=5 // pred_check
        %p273 = pneg %p272
      $region38: #{tpu_custom_call.1} parent=5 // pred_check_branch
        %275 = sbr.rel (%p273) target = $region40
      $region39: #{tpu_custom_call.1} parent=5 // pred_region
        // Predicated region
        $region41: #{tpu_custom_call.1} parent=39 // pred_check
          %p276 = pneg %p51
        $region42: #{tpu_custom_call.1} parent=39 // pred_check_branch
          %278 = sbr.rel (%p276) target = $region44
        $region43: #{tpu_custom_call.1} parent=39 // pred_region
          %s279 = sand.u32 %s41, 1
          %s280 = sand.u32 %s41, 1
          %s281 = smul.addr %s280, 8
          %s282 = scalar_lea.vmem [#allocation4], %s281
          %s283 = smul.addr %s24, 6
          %s284 = sadd.s32 %s25, %s283
          %s285 = smul.addr %s284, 4
          %s286 = scalar_lea.vmem %s0, %s285
          // Predicated region
          $region45: #{tpu_custom_call.1} parent=43 // pred_check
            _
          $region46: #{tpu_custom_call.1} parent=43 // pred_check_branch
            %288 = sbr.rel (0) target = $region48
          $region47: #{tpu_custom_call.1} parent=43 // pred_region
            // Predicated region
            $region49: #{tpu_custom_call.1} parent=47 // pred_check
              _
            $region50: #{tpu_custom_call.1} parent=47 // pred_check_branch
              %290 = sbr.rel target = $region52
            $region51: #{tpu_custom_call.1} parent=47 // pred_region
              // Predicated region
              $region64: #{tpu_custom_call.1} parent=51 // pred_check
                _
              $region65: #{tpu_custom_call.1} parent=51 // pred_check_branch
                %308 = sbr.rel (0) target = $region67
              $region66: #{tpu_custom_call.1} parent=51 // pred_region
                loop: start=0, step=1, limit=1
                $region68: #{tpu_custom_call.1} parent=66 // loop_pre_header
                  _
                $region69: #{tpu_custom_call.1} parent=66 // loop_header
                  %s310 = sphi 0, %s314
                  %p311 = scmp.ge.s32.totalorder %s310, 1
                  %s315 = sphi %s286, %s286
                  %s316 = sphi %s282, %s282
                $region70: #{tpu_custom_call.1} parent=66 // loop_header_branch
                  %313 = sbr.rel (%p311) target = $region74
                $region71: #{tpu_custom_call.1} parent=66 // loop_body
                  _
                $region72: #{tpu_custom_call.1} parent=66 // loop_footer
                  %s314 = sadd.s32 1, %s310
                $region73: #{tpu_custom_call.1} parent=66 // loop_footer_branch
                  %309 = sbr.rel target = $region69
                $region74: #{tpu_custom_call.1} parent=66 // loop_exit
                  _
                %s318 = ssub.s32 16, 1
                loop: start=0, step=1, limit=1
                $region75: #{tpu_custom_call.1} parent=66 // loop_pre_header
                  _
                $region76: #{tpu_custom_call.1} parent=66 // loop_header
                  %s320 = sphi 0, %s324
                  %p321 = scmp.ge.s32.totalorder %s320, 1
                  %s325 = sphi %s286, %s286
                  %s326 = sphi %s282, %s282
                $region77: #{tpu_custom_call.1} parent=66 // loop_header_branch
                  %323 = sbr.rel (%p321) target = $region81
                $region78: #{tpu_custom_call.1} parent=66 // loop_body
                  %v327 = vld [vmem:[%s325] sm:%s318]
                  %328 = vst [vmem:[%s326] sm:%s318] %v327
                  %v329 = vld [vmem:[%s325 + $0xc] sm:%s318]
                  %330 = vst [vmem:[%s326 + $0x4] sm:%s318] %v329
                $region79: #{tpu_custom_call.1} parent=66 // loop_footer
                  %s324 = sadd.s32 1, %s320
                $region80: #{tpu_custom_call.1} parent=66 // loop_footer_branch
                  %319 = sbr.rel target = $region76
                $region81: #{tpu_custom_call.1} parent=66 // loop_exit
                  _
              $region67: #{tpu_custom_call.1} parent=51 // pred_fallthru
                _
            $region52: #{tpu_custom_call.1} parent=47 // pred_fallthru
              _
            // Predicated region
            $region53: #{tpu_custom_call.1} parent=47 // pred_check
              _
            $region54: #{tpu_custom_call.1} parent=47 // pred_check_branch
              %292 = sbr.rel (0) target = $region56
            $region55: #{tpu_custom_call.1} parent=47 // pred_region
              %s294 = ssub.s32 16, 1
              loop: start=0, step=1, limit=1
              $region57: #{tpu_custom_call.1} parent=55 // loop_pre_header
                _
              $region58: #{tpu_custom_call.1} parent=55 // loop_header
                %s296 = sphi 0, %s300
                %p297 = scmp.ge.s32.totalorder %s296, 1
                %s301 = sphi %s286, %s286
                %s302 = sphi %s282, %s282
              $region59: #{tpu_custom_call.1} parent=55 // loop_header_branch
                %299 = sbr.rel (%p297) target = $region63
              $region60: #{tpu_custom_call.1} parent=55 // loop_body
                %v303 = vld [vmem:[%s301] sm:%s294]
                %304 = vst [vmem:[%s302] sm:%s294] %v303
                %v305 = vld [vmem:[%s301 + $0xc] sm:%s294]
                %306 = vst [vmem:[%s302 + $0x4] sm:%s294] %v305
              $region61: #{tpu_custom_call.1} parent=55 // loop_footer
                %s300 = sadd.s32 1, %s296
              $region62: #{tpu_custom_call.1} parent=55 // loop_footer_branch
                %295 = sbr.rel target = $region58
              $region63: #{tpu_custom_call.1} parent=55 // loop_exit
                _
            $region56: #{tpu_custom_call.1} parent=47 // pred_fallthru
              _
          $region48: #{tpu_custom_call.1} parent=43 // pred_fallthru
            _
          %331 = vnop
        $region44: #{tpu_custom_call.1} parent=39 // pred_fallthru
          _
        // Predicated region
        $region82: #{tpu_custom_call.1} parent=39 // pred_check
          %p332 = pneg %p79
        $region83: #{tpu_custom_call.1} parent=39 // pred_check_branch
          %334 = sbr.rel (%p332) target = $region85
        $region84: #{tpu_custom_call.1} parent=39 // pred_region
          %p335 = scmp.lt.s32.totalorder %s24, 1
          %s336 = scalar_select %p335, %s24, 1
          %p337 = scmp.lt.s32.totalorder %s25, 2
          %s338 = scalar_select %p337, %s25, 2
          %s339 = smul.addr %s338, 2
          %s340 = smul.addr %s336, 6
          %s341 = sadd.s32 %s339, %s340
          %s342 = smul.addr %s341, 4
          %s343 = scalar_lea.vmem %s1, %s342
        $region85: #{tpu_custom_call.1} parent=39 // pred_fallthru
          _
      $region40: #{tpu_custom_call.1} parent=5 // pred_fallthru
        _
      %p344 = scmp.le.s32.totalorder 1, %s17
      %p345 = scmp.lt.s32.totalorder %s17, 7
      %p346 = pnand %p344, %p345
      %p347 = pneg %p346
      // Predicated region
      $region86: #{tpu_custom_call.1} parent=5 // pred_check
        _
      $region87: #{tpu_custom_call.1} parent=5 // pred_check_branch
        %349 = sbr.rel (%p346) target = $region89
      $region88: #{tpu_custom_call.1} parent=5 // pred_region
        %s350 = ssub.s32 %s17, 1
        %s351 = sand.u32 %s44, 1
        %s352 = sand.u32 %s44, 1
        %s353 = smul.addr %s352, 8
        %s354 = scalar_lea.vmem [#allocation4], %s353
        // Predicated region
        $region90: #{tpu_custom_call.1} parent=88 // pred_check
          %p355 = pneg %p57
        $region91: #{tpu_custom_call.1} parent=88 // pred_check_branch
          %357 = sbr.rel (%p355) target = $region93
        $region92: #{tpu_custom_call.1} parent=88 // pred_region
          _
        $region93: #{tpu_custom_call.1} parent=88 // pred_fallthru
          _
        %s358 = sand.u32 %s44, 1
        %s359 = sand.u32 %s44, 1
        %s360 = smul.addr %s359, 8
        %s361 = scalar_lea.vmem [#allocation4], %s360
        %p362 = pneg %p57
        %p363 = pneg %p54
        %p364 = scmp.lt.s32.totalorder %s26, 1
        %s365 = scalar_select %p364, %s26, 1
        %p366 = scmp.lt.s32.totalorder %s27, 2
        %s367 = scalar_select %p366, %s27, 2
        %s368 = smul.addr %s367, 2
        %s369 = smul.addr %s365, 6
        %s370 = sadd.s32 %s368, %s369
        %s371 = smul.addr %s370, 4
        %s372 = scalar_lea.vmem %s1, %s371
        %p373 = pneg %p85
        %p374 = pneg %p82
        %p375 = pneg %p106
        %p376 = pneg %p103
        %p377 = pneg %p127
        %p378 = pneg %p124
        %p379 = pneg %p148
        %p380 = pneg %p145
        %p381 = pneg %p169
        %p382 = pneg %p166
        %p383 = pneg %p190
        %p384 = pneg %p187
        %p385 = pneg %p211
        %p386 = pneg %p208
        %p387 = pneg %p239
        %p388 = pneg %p236
        %s389 = sand.u32 %s226, 1
        %s390 = scalar_lea.sflag [#allocation6], %s389
        %s391 = sand.u32 %s226, 1
        %s392 = smul.addr %s391, 32
        %s393 = scalar_lea.vmem [#allocation5], %s392
        %p394 = scmp.lt.s32.totalorder %s26, 1
        %s395 = scalar_select %p394, %s26, 1
        %p396 = scmp.lt.s32.totalorder %s27, 2
        %s397 = scalar_select %p396, %s27, 2
        %s398 = smul.addr %s397, 2
        %s399 = smul.addr %s395, 6
        %s400 = sadd.s32 %s398, %s399
        %s401 = smul.addr %s400, 4
        %s402 = scalar_lea.vmem %s1, %s401
        %v404 = vld [vmem:[%s402] sm:$0xf]
        %v405 = vld [vmem:[%s402 + $0x4] sm:$0xf]
        %406 = vst [vmem:[#allocation2] sm:$0xf] %v404
        %407 = vst [vmem:[#allocation2 + $0x8] sm:$0xf] %v405
        %v408 = vld [vmem:[%s354] sm:$0xf]
        %v409 = vld [vmem:[%s354 + $0x4] sm:$0xf]
        %410 = vst [vmem:[#allocation2 + $0x4] sm:$0xf] %v408
        %411 = vst [vmem:[#allocation2 + $0xc] sm:$0xf] %v409
        %v412 = vld [vmem:[%s2] sm:$0xf]
        %v413 = vld [vmem:[%s2 + $0x4] sm:$0xf]
        %v414 = vld [vmem:[%s2 + $0x8] sm:$0xf]
        %v415 = vld [vmem:[%s2 + $0xc] sm:$0xf]
        %v416 = vld [vmem:[#allocation2] sm:$0xff]
        %v417 = vld [vmem:[#allocation2 + $0x8] sm:$0xff]
        %s418 = scalar_lea.vmem %s2, 16
        %v419 = vld [vmem:[%s418] sm:$0xf]
        %v420 = vld [vmem:[%s418 + $0x4] sm:$0xf]
        %v421 = vld [vmem:[%s418 + $0x8] sm:$0xf]
        %v422 = vld [vmem:[%s418 + $0xc] sm:$0xf]
        %v427 = vunpack.c.l.b16 %v419
        %v428 = vunpack.c.l.b16 %v420
        %v429 = vunpack.c.l.b16 %v421
        %v430 = vunpack.c.l.b16 %v422
        %v431 = vpack.c.b16 %v428, %v427
        %v432 = vpack.c.b16 %v430, %v429
        %v435 = vunpack.c.l.b16 %v416
        %v436 = vunpack.c.h.b16 %v416
        %v437 = vunpack.c.l.b16 %v417
        %v438 = vunpack.c.h.b16 %v417
        %v439 = vpack.c.b16 %v437, %v435
        %v440 = vpack.c.b16 %v438, %v436
        %441 = vrot.lane.b32.xlu0 %v439, 6
        %v442 = vpop.permute.xlu0 %441
        %443 = vrot.lane.b32.xlu0 %v440, 6
        %v444 = vpop.permute.xlu0 %443
        %vm445 = vcmask 48128
        %v446 = vsel %vm445, %v442, %v444
        %vm449 = vcmask 130048
        %v451 = vsel %vm449, %v431, 0
        %v454 = vsel %vm449, %v432, 0
        %456 = vmatprep.subr.bf16.mxu0 0
        %457 = vmatpush1.bf16.msra.mxu0 0
        %458 = vmatprep.subr.bf16.mxu0 0
        %459 = vmatpush1.bf16.msra.mxu0 0
        %460 = vmatprep.subr.bf16.mxu0 0
        %461 = vmatpush1.bf16.msra.mxu0 0
        %462 = vmatprep.subr.bf16.mxu0 0
        %463 = vmatpush1.bf16.msra.mxu0 0
        %464 = vmatprep.subr.bf16.mxu0 0
        %465 = vmatpush1.bf16.msra.mxu0 0
        %466 = vmatprep.subr.bf16.mxu0 0
        %467 = vmatpush1.bf16.msra.mxu0 0
        %468 = vmatprep.subr.bf16.mxu0 0
        %469 = vmatpush1.bf16.msra.mxu0 0
        %470 = vmatprep.subr.bf16.mxu0 %v444
        %471 = vmatpush1.bf16.msra.mxu0 %v446
        %472 = vmatprep.subr.bf16.mxu0 0
        %473 = vmatpush2.bf16.msra.mxu0 0
        %474 = vmatprep.subr.bf16.mxu0 0
        %475 = vmatpush2.bf16.msra.mxu0 0
        %476 = vmatprep.subr.bf16.mxu0 0
        %477 = vmatpush2.bf16.msra.mxu0 0
        %478 = vmatprep.subr.bf16.mxu0 0
        %479 = vmatpush2.bf16.msra.mxu0 0
        %480 = vmatprep.subr.bf16.mxu0 0
        %481 = vmatpush2.bf16.msra.mxu0 0
        %482 = vmatprep.subr.bf16.mxu0 0
        %483 = vmatpush2.bf16.msra.mxu0 0
        %484 = vmatprep.subr.bf16.mxu0 0
        %485 = vmatpush2.bf16.msra.mxu0 0
        %486 = vmatprep.subr.bf16.mxu0 0
        %487 = vmatpush2.bf16.msra.mxu0 0
        %488 = vmatprep.mubr.bf16.mxu0 0
        %489 = vmatmul.mubr.bf16.gmra.mxu0 %v451
        %v490 = vpop.f32.mrf.mxu0
        %v491 = vadd.f32 0.0, %v490
        %v492 = vpop.f32.mrf.mxu0
        %v493 = vadd.f32 0.0, %v492
        %v494 = vpop.f32.mrf.mxu0
        %v495 = vadd.f32 0.0, %v494
        %v496 = vpop.f32.mrf.mxu0
        %v497 = vadd.f32 0.0, %v496
        %498 = vmatprep.mubr.bf16.mxu0 0
        %499 = vmatmul.mubr.bf16.gmra.mxu0 %v454
        %v500 = vpop.f32.mrf.mxu0
        %v501 = vadd.f32 0.0, %v500
        %v502 = vpop.f32.mrf.mxu0
        %v503 = vadd.f32 0.0, %v502
        %v504 = vpop.f32.mrf.mxu0
        %v505 = vadd.f32 0.0, %v504
        %v506 = vpop.f32.mrf.mxu0
        %v507 = vadd.f32 0.0, %v506
        %508 = vdwg.mxu0
        %v513 = vunpack.c.l.b16 %v412
        %v514 = vunpack.c.l.b16 %v413
        %v515 = vunpack.c.l.b16 %v414
        %v516 = vunpack.c.l.b16 %v415
        %v517 = vpack.c.b16 %v514, %v513
        %v518 = vpack.c.b16 %v516, %v515
        %519 = vrot.lane.b32.xlu0 %v439, 8
        %v520 = vpop.permute.xlu0 %519
        %521 = vrot.lane.b32.xlu0 %v440, 8
        %v522 = vpop.permute.xlu0 %521
        %vm523 = vcmask 64512
        %v524 = vsel %vm523, %v520, %v522
        %v528 = vsel %vm449, %v517, 0
        %v531 = vsel %vm449, %v518, 0
        %533 = vmatprep.subr.bf16.mxu0 0
        %534 = vmatpush1.bf16.msra.mxu0 0
        %535 = vmatprep.subr.bf16.mxu0 0
        %536 = vmatpush1.bf16.msra.mxu0 0
        %537 = vmatprep.subr.bf16.mxu0 0
        %538 = vmatpush1.bf16.msra.mxu0 0
        %539 = vmatprep.subr.bf16.mxu0 0
        %540 = vmatpush1.bf16.msra.mxu0 0
        %541 = vmatprep.subr.bf16.mxu0 0
        %542 = vmatpush1.bf16.msra.mxu0 0
        %543 = vmatprep.subr.bf16.mxu0 0
        %544 = vmatpush1.bf16.msra.mxu0 0
        %545 = vmatprep.subr.bf16.mxu0 0
        %546 = vmatpush1.bf16.msra.mxu0 0
        %547 = vmatprep.subr.bf16.mxu0 %v522
        %548 = vmatpush1.bf16.msra.mxu0 %v524
        %549 = vmatprep.subr.bf16.mxu0 0
        %550 = vmatpush2.bf16.msra.mxu0 0
        %551 = vmatprep.subr.bf16.mxu0 0
        %552 = vmatpush2.bf16.msra.mxu0 0
        %553 = vmatprep.subr.bf16.mxu0 0
        %554 = vmatpush2.bf16.msra.mxu0 0
        %555 = vmatprep.subr.bf16.mxu0 0
        %556 = vmatpush2.bf16.msra.mxu0 0
        %557 = vmatprep.subr.bf16.mxu0 0
        %558 = vmatpush2.bf16.msra.mxu0 0
        %559 = vmatprep.subr.bf16.mxu0 0
        %560 = vmatpush2.bf16.msra.mxu0 0
        %561 = vmatprep.subr.bf16.mxu0 0
        %562 = vmatpush2.bf16.msra.mxu0 0
        %563 = vmatprep.subr.bf16.mxu0 0
        %564 = vmatpush2.bf16.msra.mxu0 0
        %565 = vmatprep.mubr.bf16.mxu0 0
        %566 = vmatmul.mubr.bf16.gmra.mxu0 %v528
        %v567 = vpop.f32.mrf.mxu0
        %v568 = vadd.f32 %v491, %v567
        %v569 = vpop.f32.mrf.mxu0
        %v570 = vadd.f32 %v493, %v569
        %v571 = vpop.f32.mrf.mxu0
        %v572 = vadd.f32 %v495, %v571
        %v573 = vpop.f32.mrf.mxu0
        %v574 = vadd.f32 %v497, %v573
        %575 = vmatprep.mubr.bf16.mxu0 0
        %576 = vmatmul.mubr.bf16.gmra.mxu0 %v531
        %v577 = vpop.f32.mrf.mxu0
        %v578 = vadd.f32 %v501, %v577
        %v579 = vpop.f32.mrf.mxu0
        %v580 = vadd.f32 %v503, %v579
        %v581 = vpop.f32.mrf.mxu0
        %v582 = vadd.f32 %v505, %v581
        %v583 = vpop.f32.mrf.mxu0
        %v584 = vadd.f32 %v507, %v583
        %585 = vdwg.mxu0
        %s586 = scalar_lea.vmem %s2, 32
        %v587 = vld [vmem:[%s586] sm:$0xf]
        %v588 = vld [vmem:[%s586 + $0x4] sm:$0xf]
        %v589 = vld [vmem:[%s586 + $0x8] sm:$0xf]
        %v590 = vld [vmem:[%s586 + $0xc] sm:$0xf]
        %v595 = vunpack.c.l.b16 %v587
        %v596 = vunpack.c.l.b16 %v588
        %v597 = vunpack.c.l.b16 %v589
        %v598 = vunpack.c.l.b16 %v590
        %v599 = vpack.c.b16 %v596, %v595
        %v600 = vpack.c.b16 %v598, %v597
        %601 = vrot.lane.b32.xlu0 %v439, 4
        %v602 = vpop.permute.xlu0 %601
        %603 = vrot.lane.b32.xlu0 %v440, 4
        %v604 = vpop.permute.xlu0 %603
        %vm605 = vcmask 31744
        %v606 = vsel %vm605, %v602, %v604
        %v610 = vsel %vm449, %v599, 0
        %v613 = vsel %vm449, %v600, 0
        %615 = vmatprep.subr.bf16.mxu0 0
        %616 = vmatpush1.bf16.msra.mxu0 0
        %617 = vmatprep.subr.bf16.mxu0 0
        %618 = vmatpush1.bf16.msra.mxu0 0
        %619 = vmatprep.subr.bf16.mxu0 0
        %620 = vmatpush1.bf16.msra.mxu0 0
        %621 = vmatprep.subr.bf16.mxu0 0
        %622 = vmatpush1.bf16.msra.mxu0 0
        %623 = vmatprep.subr.bf16.mxu0 0
        %624 = vmatpush1.bf16.msra.mxu0 0
        %625 = vmatprep.subr.bf16.mxu0 0
        %626 = vmatpush1.bf16.msra.mxu0 0
        %627 = vmatprep.subr.bf16.mxu0 0
        %628 = vmatpush1.bf16.msra.mxu0 0
        %629 = vmatprep.subr.bf16.mxu0 %v604
        %630 = vmatpush1.bf16.msra.mxu0 %v606
        %631 = vmatprep.subr.bf16.mxu0 0
        %632 = vmatpush2.bf16.msra.mxu0 0
        %633 = vmatprep.subr.bf16.mxu0 0
        %634 = vmatpush2.bf16.msra.mxu0 0
        %635 = vmatprep.subr.bf16.mxu0 0
        %636 = vmatpush2.bf16.msra.mxu0 0
        %637 = vmatprep.subr.bf16.mxu0 0
        %638 = vmatpush2.bf16.msra.mxu0 0
        %639 = vmatprep.subr.bf16.mxu0 0
        %640 = vmatpush2.bf16.msra.mxu0 0
        %641 = vmatprep.subr.bf16.mxu0 0
        %642 = vmatpush2.bf16.msra.mxu0 0
        %643 = vmatprep.subr.bf16.mxu0 0
        %644 = vmatpush2.bf16.msra.mxu0 0
        %645 = vmatprep.subr.bf16.mxu0 0
        %646 = vmatpush2.bf16.msra.mxu0 0
        %647 = vmatprep.mubr.bf16.mxu0 0
        %648 = vmatmul.mubr.bf16.gmra.mxu0 %v610
        %v649 = vpop.f32.mrf.mxu0
        %v650 = vadd.f32 0.0, %v649
        %v651 = vpop.f32.mrf.mxu0
        %v652 = vadd.f32 0.0, %v651
        %v653 = vpop.f32.mrf.mxu0
        %v654 = vadd.f32 0.0, %v653
        %v655 = vpop.f32.mrf.mxu0
        %v656 = vadd.f32 0.0, %v655
        %657 = vmatprep.mubr.bf16.mxu0 0
        %658 = vmatmul.mubr.bf16.gmra.mxu0 %v613
        %v659 = vpop.f32.mrf.mxu0
        %v660 = vadd.f32 0.0, %v659
        %v661 = vpop.f32.mrf.mxu0
        %v662 = vadd.f32 0.0, %v661
        %v663 = vpop.f32.mrf.mxu0
        %v664 = vadd.f32 0.0, %v663
        %v665 = vpop.f32.mrf.mxu0
        %v666 = vadd.f32 0.0, %v665
        %667 = vdwg.mxu0
        %v668 = vadd.f32 %v568, %v650
        %v669 = vadd.f32 %v570, %v652
        %v670 = vadd.f32 %v572, %v654
        %v671 = vadd.f32 %v574, %v656
        %v672 = vadd.f32 %v578, %v660
        %v673 = vadd.f32 %v580, %v662
        %v674 = vadd.f32 %v582, %v664
        %v675 = vadd.f32 %v584, %v666
        %v676 = vld [vmem:[%s3] sm:$0xff]
        %v677 = vld [vmem:[%s3 + $0x8] sm:$0xff]
        %v678 = vld [vmem:[%s3 + $0x10] sm:$0xff]
        %v679 = vld [vmem:[%s3 + $0x18] sm:$0xff]
        %681 = vset.pattern.permute.xlu0 0
        %682 = vperm.xlu0 %681, %v676
        %v683 = vpop.permute.xlu0 %682
        %686 = vset.pattern.permute.xlu0 0
        %687 = vperm.xlu0 %686, %v677
        %v688 = vpop.permute.xlu0 %687
        %691 = vset.pattern.permute.xlu0 0
        %692 = vperm.xlu0 %691, %v678
        %v693 = vpop.permute.xlu0 %692
        %696 = vset.pattern.permute.xlu0 0
        %697 = vperm.xlu0 %696, %v679
        %v698 = vpop.permute.xlu0 %697
        %v700 = vadd.f32 %v668, %v683
        %v701 = vadd.f32 %v669, %v683
        %v702 = vadd.f32 %v670, %v688
        %v703 = vadd.f32 %v671, %v688
        %v704 = vadd.f32 %v672, %v693
        %v705 = vadd.f32 %v673, %v693
        %v706 = vadd.f32 %v674, %v698
        %v707 = vadd.f32 %v675, %v698
        %v708 = vmax.f32 %v700, 0.0
        %v709 = vmax.f32 %v701, 0.0
        %v710 = vmax.f32 %v702, 0.0
        %v711 = vmax.f32 %v703, 0.0
        %v712 = vmax.f32 %v704, 0.0
        %v713 = vmax.f32 %v705, 0.0
        %v714 = vmax.f32 %v706, 0.0
        %v715 = vmax.f32 %v707, 0.0
        %v716 = vpack.c.bf16 %v710, %v708
        %v717 = vpack.c.bf16 %v711, %v709
        %v718 = vpack.c.bf16 %v714, %v712
        %v719 = vpack.c.bf16 %v715, %v713
        %v724 = vunpack.c.l.b16 %v716
        %v725 = vunpack.c.l.b16 %v717
        %v726 = vunpack.c.h.b16 %v716
        %v727 = vunpack.c.h.b16 %v717
        %v728 = vunpack.c.l.b16 %v718
        %v729 = vunpack.c.l.b16 %v719
        %v730 = vunpack.c.h.b16 %v718
        %v731 = vunpack.c.h.b16 %v719
        %v732 = vpack.c.b16 %v725, %v724
        %v733 = vpack.c.b16 %v727, %v726
        %v734 = vpack.c.b16 %v729, %v728
        %v735 = vpack.c.b16 %v731, %v730
        %vm740 = vcmask 1043456
        %vm741 = vcmask 31748
        %vm742 = vmor %vm741, %vm740
        %743 = vst.msk [vmem:[#allocation3] sm:$0xff] %vm742, %v732
        %744 = vst.msk [vmem:[#allocation3 + $0x8] sm:$0xff] %vm742, %v733
        %745 = vst.msk [vmem:[#allocation3 + $0x10] sm:$0xff] %vm742, %v734
        %746 = vst.msk [vmem:[#allocation3 + $0x18] sm:$0xff] %vm742, %v735
        %p747 = scmp.eq.s32.totalorder %s27, 0
        // Predicated region
        $region94: #{tpu_custom_call.1} parent=88 // pred_check
          %p748 = pneg %p747
        $region95: #{tpu_custom_call.1} parent=88 // pred_check_branch
          %750 = sbr.rel (%p748) target = $region97
        $region96: #{tpu_custom_call.1} parent=88 // pred_region
          %vm751 = vcmask 27648
          %752 = vst.msk [vmem:[#allocation3] sm:$0xf] %vm751, 0
          %753 = vst.msk [vmem:[#allocation3 + $0x8] sm:$0xf] %vm751, 0
          %754 = vst.msk [vmem:[#allocation3 + $0x10] sm:$0xf] %vm751, 0
          %755 = vst.msk [vmem:[#allocation3 + $0x18] sm:$0xf] %vm751, 0
        $region97: #{tpu_custom_call.1} parent=88 // pred_fallthru
          _
        %v756 = vld [vmem:[%s4] sm:$0xf]
        %v757 = vld [vmem:[%s4 + $0x4] sm:$0xf]
        %v758 = vld [vmem:[%s4 + $0x8] sm:$0xf]
        %v759 = vld [vmem:[%s4 + $0xc] sm:$0xf]
        %v760 = vld [vmem:[#allocation3] sm:$0xf]
        %v761 = vld [vmem:[#allocation3 + $0x8] sm:$0xf]
        %v762 = vld [vmem:[#allocation3 + $0x10] sm:$0xf]
        %v763 = vld [vmem:[#allocation3 + $0x18] sm:$0xf]
        %s764 = scalar_lea.vmem %s4, 16
        %v765 = vld [vmem:[%s764] sm:$0xf]
        %v766 = vld [vmem:[%s764 + $0x4] sm:$0xf]
        %v767 = vld [vmem:[%s764 + $0x8] sm:$0xf]
        %v768 = vld [vmem:[%s764 + $0xc] sm:$0xf]
        %v769 = vld [vmem:[#allocation3] sm:$0xff]
        %v770 = vld [vmem:[#allocation3 + $0x8] sm:$0xff]
        %v771 = vld [vmem:[#allocation3 + $0x10] sm:$0xff]
        %v772 = vld [vmem:[#allocation3 + $0x18] sm:$0xff]
        %v777 = vunpack.c.l.b16 %v765
        %v778 = vunpack.c.l.b16 %v766
        %v779 = vunpack.c.l.b16 %v767
        %v780 = vunpack.c.l.b16 %v768
        %v781 = vpack.c.b16 %v778, %v777
        %v782 = vpack.c.b16 %v780, %v779
        %v787 = vunpack.c.l.b16 %v769
        %v788 = vunpack.c.h.b16 %v769
        %v789 = vunpack.c.l.b16 %v770
        %v790 = vunpack.c.h.b16 %v770
        %v791 = vunpack.c.l.b16 %v771
        %v792 = vunpack.c.h.b16 %v771
        %v793 = vunpack.c.l.b16 %v772
        %v794 = vunpack.c.h.b16 %v772
        %v795 = vpack.c.b16 %v789, %v787
        %v796 = vpack.c.b16 %v790, %v788
        %v797 = vpack.c.b16 %v793, %v791
        %v798 = vpack.c.b16 %v794, %v792
        %799 = vrot.lane.b32.xlu0 %v795, 126
        %v800 = vpop.permute.xlu0 %799
        %801 = vrot.lane.b32.xlu0 %v796, 126
        %v802 = vpop.permute.xlu0 %801
        %803 = vrot.lane.b32.xlu0 %v797, 126
        %v804 = vpop.permute.xlu0 %803
        %805 = vrot.lane.b32.xlu0 %v798, 126
        %v806 = vpop.permute.xlu0 %805
        %vm807 = vcmask 1031168
        %v808 = vsel %vm807, %v800, %v802
        %v809 = vsel %vm807, %v804, %v806
        %vm812 = vcmask 261120
        %v814 = vsel %vm812, %v781, 0
        %v817 = vsel %vm812, %v782, 0
        %819 = vmatprep.subr.bf16.mxu0 0
        %820 = vmatpush1.bf16.msra.mxu0 0
        %821 = vmatprep.subr.bf16.mxu0 0
        %822 = vmatpush1.bf16.msra.mxu0 0
        %823 = vmatprep.subr.bf16.mxu0 0
        %824 = vmatpush1.bf16.msra.mxu0 0
        %825 = vmatprep.subr.bf16.mxu0 0
        %826 = vmatpush1.bf16.msra.mxu0 0
        %827 = vmatprep.subr.bf16.mxu0 0
        %828 = vmatpush1.bf16.msra.mxu0 0
        %829 = vmatprep.subr.bf16.mxu0 0
        %830 = vmatpush1.bf16.msra.mxu0 0
        %831 = vmatprep.subr.bf16.mxu0 0
        %832 = vmatpush1.bf16.msra.mxu0 %v809
        %833 = vmatprep.subr.bf16.mxu0 0
        %834 = vmatpush1.bf16.msra.mxu0 %v808
        %835 = vmatprep.subr.bf16.mxu0 0
        %836 = vmatpush2.bf16.msra.mxu0 0
        %837 = vmatprep.subr.bf16.mxu0 0
        %838 = vmatpush2.bf16.msra.mxu0 0
        %839 = vmatprep.subr.bf16.mxu0 0
        %840 = vmatpush2.bf16.msra.mxu0 0
        %841 = vmatprep.subr.bf16.mxu0 0
        %842 = vmatpush2.bf16.msra.mxu0 0
        %843 = vmatprep.subr.bf16.mxu0 0
        %844 = vmatpush2.bf16.msra.mxu0 0
        %845 = vmatprep.subr.bf16.mxu0 0
        %846 = vmatpush2.bf16.msra.mxu0 0
        %847 = vmatprep.subr.bf16.mxu0 0
        %848 = vmatpush2.bf16.msra.mxu0 0
        %849 = vmatprep.subr.bf16.mxu0 0
        %850 = vmatpush2.bf16.msra.mxu0 0
        %851 = vmatprep.mubr.bf16.mxu0 0
        %852 = vmatmul.mubr.bf16.gmra.mxu0 %v814
        %v853 = vpop.f32.mrf.mxu0
        %v854 = vadd.f32 0.0, %v853
        %v855 = vpop.f32.mrf.mxu0
        %v856 = vpop.f32.mrf.mxu0
        %v857 = vadd.f32 0.0, %v856
        %v858 = vpop.f32.mrf.mxu0
        %859 = vmatprep.mubr.bf16.mxu0 0
        %860 = vmatmul.mubr.bf16.gmra.mxu0 %v817
        %v861 = vpop.f32.mrf.mxu0
        %v862 = vadd.f32 0.0, %v861
        %v863 = vpop.f32.mrf.mxu0
        %v864 = vpop.f32.mrf.mxu0
        %v865 = vadd.f32 0.0, %v864
        %v866 = vpop.f32.mrf.mxu0
        %867 = vdwg.mxu0
        %v872 = vunpack.c.l.b16 %v756
        %v873 = vunpack.c.l.b16 %v757
        %v874 = vunpack.c.l.b16 %v758
        %v875 = vunpack.c.l.b16 %v759
        %v876 = vpack.c.b16 %v873, %v872
        %v877 = vpack.c.b16 %v875, %v874
        %v882 = vunpack.c.l.b16 %v760
        %v883 = vunpack.c.l.b16 %v761
        %v884 = vunpack.c.l.b16 %v762
        %v885 = vunpack.c.l.b16 %v763
        %v886 = vpack.c.b16 %v883, %v882
        %v887 = vpack.c.b16 %v885, %v884
        %v891 = vsel %vm812, %v876, 0
        %v894 = vsel %vm812, %v877, 0
        %896 = vmatprep.subr.bf16.mxu0 0
        %897 = vmatpush1.bf16.msra.mxu0 0
        %898 = vmatprep.subr.bf16.mxu0 0
        %899 = vmatpush1.bf16.msra.mxu0 0
        %900 = vmatprep.subr.bf16.mxu0 0
        %901 = vmatpush1.bf16.msra.mxu0 0
        %902 = vmatprep.subr.bf16.mxu0 0
        %903 = vmatpush1.bf16.msra.mxu0 0
        %904 = vmatprep.subr.bf16.mxu0 0
        %905 = vmatpush1.bf16.msra.mxu0 0
        %906 = vmatprep.subr.bf16.mxu0 0
        %907 = vmatpush1.bf16.msra.mxu0 0
        %908 = vmatprep.subr.bf16.mxu0 0
        %909 = vmatpush1.bf16.msra.mxu0 %v887
        %910 = vmatprep.subr.bf16.mxu0 0
        %911 = vmatpush1.bf16.msra.mxu0 %v886
        %912 = vmatprep.subr.bf16.mxu0 0
        %913 = vmatpush2.bf16.msra.mxu0 0
        %914 = vmatprep.subr.bf16.mxu0 0
        %915 = vmatpush2.bf16.msra.mxu0 0
        %916 = vmatprep.subr.bf16.mxu0 0
        %917 = vmatpush2.bf16.msra.mxu0 0
        %918 = vmatprep.subr.bf16.mxu0 0
        %919 = vmatpush2.bf16.msra.mxu0 0
        %920 = vmatprep.subr.bf16.mxu0 0
        %921 = vmatpush2.bf16.msra.mxu0 0
        %922 = vmatprep.subr.bf16.mxu0 0
        %923 = vmatpush2.bf16.msra.mxu0 0
        %924 = vmatprep.subr.bf16.mxu0 0
        %925 = vmatpush2.bf16.msra.mxu0 0
        %926 = vmatprep.subr.bf16.mxu0 0
        %927 = vmatpush2.bf16.msra.mxu0 0
        %928 = vmatprep.mubr.bf16.mxu0 0
        %929 = vmatmul.mubr.bf16.gmra.mxu0 %v891
        %v930 = vpop.f32.mrf.mxu0
        %v931 = vadd.f32 %v854, %v930
        %v932 = vpop.f32.mrf.mxu0
        %v933 = vpop.f32.mrf.mxu0
        %v934 = vadd.f32 %v857, %v933
        %v935 = vpop.f32.mrf.mxu0
        %936 = vmatprep.mubr.bf16.mxu0 0
        %937 = vmatmul.mubr.bf16.gmra.mxu0 %v894
        %v938 = vpop.f32.mrf.mxu0
        %v939 = vadd.f32 %v862, %v938
        %v940 = vpop.f32.mrf.mxu0
        %v941 = vpop.f32.mrf.mxu0
        %v942 = vadd.f32 %v865, %v941
        %v943 = vpop.f32.mrf.mxu0
        %944 = vdwg.mxu0
        %s945 = scalar_lea.vmem %s4, 32
        %v946 = vld [vmem:[%s945] sm:$0xf]
        %v947 = vld [vmem:[%s945 + $0x4] sm:$0xf]
        %v948 = vld [vmem:[%s945 + $0x8] sm:$0xf]
        %v949 = vld [vmem:[%s945 + $0xc] sm:$0xf]
        %v954 = vunpack.c.l.b16 %v946
        %v955 = vunpack.c.l.b16 %v947
        %v956 = vunpack.c.l.b16 %v948
        %v957 = vunpack.c.l.b16 %v949
        %v958 = vpack.c.b16 %v955, %v954
        %v959 = vpack.c.b16 %v957, %v956
        %960 = vrot.lane.b32.xlu0 %v795, 124
        %v961 = vpop.permute.xlu0 %960
        %962 = vrot.lane.b32.xlu0 %v796, 124
        %v963 = vpop.permute.xlu0 %962
        %964 = vrot.lane.b32.xlu0 %v797, 124
        %v965 = vpop.permute.xlu0 %964
        %966 = vrot.lane.b32.xlu0 %v798, 124
        %v967 = vpop.permute.xlu0 %966
        %vm968 = vcmask 1014784
        %v969 = vsel %vm968, %v961, %v963
        %v970 = vsel %vm968, %v965, %v967
        %v974 = vsel %vm812, %v958, 0
        %v977 = vsel %vm812, %v959, 0
        %979 = vmatprep.subr.bf16.mxu0 0
        %980 = vmatpush1.bf16.msra.mxu0 0
        %981 = vmatprep.subr.bf16.mxu0 0
        %982 = vmatpush1.bf16.msra.mxu0 0
        %983 = vmatprep.subr.bf16.mxu0 0
        %984 = vmatpush1.bf16.msra.mxu0 0
        %985 = vmatprep.subr.bf16.mxu0 0
        %986 = vmatpush1.bf16.msra.mxu0 0
        %987 = vmatprep.subr.bf16.mxu0 0
        %988 = vmatpush1.bf16.msra.mxu0 0
        %989 = vmatprep.subr.bf16.mxu0 0
        %990 = vmatpush1.bf16.msra.mxu0 0
        %991 = vmatprep.subr.bf16.mxu0 0
        %992 = vmatpush1.bf16.msra.mxu0 %v970
        %993 = vmatprep.subr.bf16.mxu0 0
        %994 = vmatpush1.bf16.msra.mxu0 %v969
        %995 = vmatprep.subr.bf16.mxu0 0
        %996 = vmatpush2.bf16.msra.mxu0 0
        %997 = vmatprep.subr.bf16.mxu0 0
        %998 = vmatpush2.bf16.msra.mxu0 0
        %999 = vmatprep.subr.bf16.mxu0 0
        %1000 = vmatpush2.bf16.msra.mxu0 0
        %1001 = vmatprep.subr.bf16.mxu0 0
        %1002 = vmatpush2.bf16.msra.mxu0 0
        %1003 = vmatprep.subr.bf16.mxu0 0
        %1004 = vmatpush2.bf16.msra.mxu0 0
        %1005 = vmatprep.subr.bf16.mxu0 0
        %1006 = vmatpush2.bf16.msra.mxu0 0
        %1007 = vmatprep.subr.bf16.mxu0 0
        %1008 = vmatpush2.bf16.msra.mxu0 0
        %1009 = vmatprep.subr.bf16.mxu0 0
        %1010 = vmatpush2.bf16.msra.mxu0 0
        %1011 = vmatprep.mubr.bf16.mxu0 0
        %1012 = vmatmul.mubr.bf16.gmra.mxu0 %v974
        %v1013 = vpop.f32.mrf.mxu0
        %v1014 = vadd.f32 0.0, %v1013
        %v1015 = vpop.f32.mrf.mxu0
        %v1016 = vpop.f32.mrf.mxu0
        %v1017 = vadd.f32 0.0, %v1016
        %v1018 = vpop.f32.mrf.mxu0
        %1019 = vmatprep.mubr.bf16.mxu0 0
        %1020 = vmatmul.mubr.bf16.gmra.mxu0 %v977
        %v1021 = vpop.f32.mrf.mxu0
        %v1022 = vadd.f32 0.0, %v1021
        %v1023 = vpop.f32.mrf.mxu0
        %v1024 = vpop.f32.mrf.mxu0
        %v1025 = vadd.f32 0.0, %v1024
        %v1026 = vpop.f32.mrf.mxu0
        %1027 = vdwg.mxu0
        %v1028 = vadd.f32 %v931, %v1014
        %v1029 = vadd.f32 %v934, %v1017
        %v1030 = vadd.f32 %v939, %v1022
        %v1031 = vadd.f32 %v942, %v1025
        %v1032 = vld [vmem:[%s5] sm:$0xff]
        %v1033 = vld [vmem:[%s5 + $0x8] sm:$0xff]
        %v1034 = vld [vmem:[%s5 + $0x10] sm:$0xff]
        %v1035 = vld [vmem:[%s5 + $0x18] sm:$0xff]
        %1037 = vset.pattern.permute.xlu0 0
        %1038 = vperm.xlu0 %1037, %v1032
        %v1039 = vpop.permute.xlu0 %1038
        %1042 = vset.pattern.permute.xlu0 0
        %1043 = vperm.xlu0 %1042, %v1033
        %v1044 = vpop.permute.xlu0 %1043
        %1047 = vset.pattern.permute.xlu0 0
        %1048 = vperm.xlu0 %1047, %v1034
        %v1049 = vpop.permute.xlu0 %1048
        %1052 = vset.pattern.permute.xlu0 0
        %1053 = vperm.xlu0 %1052, %v1035
        %v1054 = vpop.permute.xlu0 %1053
        %v1056 = vadd.f32 %v1028, %v1039
        %v1057 = vadd.f32 %v1029, %v1044
        %v1058 = vadd.f32 %v1030, %v1049
        %v1059 = vadd.f32 %v1031, %v1054
        %v1060 = vmax.f32 %v1056, 0.0
        %v1061 = vmax.f32 %v1057, 0.0
        %v1062 = vmax.f32 %v1058, 0.0
        %v1063 = vmax.f32 %v1059, 0.0
        %v1064 = vld [vmem:[%s6] sm:$0xf]
        %v1065 = vld [vmem:[%s6 + $0x4] sm:$0xf]
        %v1066 = vld [vmem:[%s6 + $0x8] sm:$0xf]
        %v1067 = vld [vmem:[%s6 + $0xc] sm:$0xf]
        %v1068 = vld [vmem:[%s354] sm:$0xf]
        %v1069 = vld [vmem:[%s354 + $0x4] sm:$0xf]
        %v1070 = vld [vmem:[%s7] sm:$0xff]
        %v1071 = vld [vmem:[%s7 + $0x8] sm:$0xff]
        %v1072 = vld [vmem:[%s7 + $0x10] sm:$0xff]
        %v1073 = vld [vmem:[%s7 + $0x18] sm:$0xff]
        %1075 = vset.pattern.permute.xlu0 0
        %1076 = vperm.xlu0 %1075, %v1070
        %v1077 = vpop.permute.xlu0 %1076
        %1080 = vset.pattern.permute.xlu0 0
        %1081 = vperm.xlu0 %1080, %v1071
        %v1082 = vpop.permute.xlu0 %1081
        %1085 = vset.pattern.permute.xlu0 0
        %1086 = vperm.xlu0 %1085, %v1072
        %v1087 = vpop.permute.xlu0 %1086
        %1090 = vset.pattern.permute.xlu0 0
        %1091 = vperm.xlu0 %1090, %v1073
        %v1092 = vpop.permute.xlu0 %1091
        %v1098 = vunpack.c.l.b16 %v1064
        %v1099 = vunpack.c.l.b16 %v1065
        %v1100 = vunpack.c.l.b16 %v1066
        %v1101 = vunpack.c.l.b16 %v1067
        %v1102 = vpack.c.b16 %v1099, %v1098
        %v1103 = vpack.c.b16 %v1101, %v1100
        %v1106 = vunpack.c.l.b16 %v1068
        %v1107 = vunpack.c.l.b16 %v1069
        %v1108 = vpack.c.b16 %v1107, %v1106
        %v1111 = vsel %vm449, %v1102, 0
        %v1114 = vsel %vm449, %v1103, 0
        %1116 = vmatprep.subr.bf16.mxu0 0
        %1117 = vmatpush1.bf16.msra.mxu0 0
        %1118 = vmatprep.subr.bf16.mxu0 0
        %1119 = vmatpush1.bf16.msra.mxu0 0
        %1120 = vmatprep.subr.bf16.mxu0 0
        %1121 = vmatpush1.bf16.msra.mxu0 0
        %1122 = vmatprep.subr.bf16.mxu0 0
        %1123 = vmatpush1.bf16.msra.mxu0 0
        %1124 = vmatprep.subr.bf16.mxu0 0
        %1125 = vmatpush1.bf16.msra.mxu0 0
        %1126 = vmatprep.subr.bf16.mxu0 0
        %1127 = vmatpush1.bf16.msra.mxu0 0
        %1128 = vmatprep.subr.bf16.mxu0 0
        %1129 = vmatpush1.bf16.msra.mxu0 0
        %1130 = vmatprep.subr.bf16.mxu0 0
        %1131 = vmatpush1.bf16.msra.mxu0 %v1108
        %1132 = vmatprep.subr.bf16.mxu0 0
        %1133 = vmatpush2.bf16.msra.mxu0 0
        %1134 = vmatprep.subr.bf16.mxu0 0
        %1135 = vmatpush2.bf16.msra.mxu0 0
        %1136 = vmatprep.subr.bf16.mxu0 0
        %1137 = vmatpush2.bf16.msra.mxu0 0
        %1138 = vmatprep.subr.bf16.mxu0 0
        %1139 = vmatpush2.bf16.msra.mxu0 0
        %1140 = vmatprep.subr.bf16.mxu0 0
        %1141 = vmatpush2.bf16.msra.mxu0 0
        %1142 = vmatprep.subr.bf16.mxu0 0
        %1143 = vmatpush2.bf16.msra.mxu0 0
        %1144 = vmatprep.subr.bf16.mxu0 0
        %1145 = vmatpush2.bf16.msra.mxu0 0
        %1146 = vmatprep.subr.bf16.mxu0 0
        %1147 = vmatpush2.bf16.msra.mxu0 0
        %1148 = vmatprep.mubr.bf16.mxu0 0
        %1149 = vmatmul.mubr.bf16.gmra.mxu0 %v1111
        %v1150 = vpop.f32.mrf.mxu0
        %v1151 = vadd.f32 %v1077, %v1150
        %v1152 = vpop.f32.mrf.mxu0
        %v1153 = vpop.f32.mrf.mxu0
        %v1154 = vadd.f32 %v1082, %v1153
        %v1155 = vpop.f32.mrf.mxu0
        %1156 = vmatprep.mubr.bf16.mxu0 0
        %1157 = vmatmul.mubr.bf16.gmra.mxu0 %v1114
        %v1158 = vpop.f32.mrf.mxu0
        %v1159 = vadd.f32 %v1087, %v1158
        %v1160 = vpop.f32.mrf.mxu0
        %v1161 = vpop.f32.mrf.mxu0
        %v1162 = vadd.f32 %v1092, %v1161
        %v1163 = vpop.f32.mrf.mxu0
        %1164 = vdwg.mxu0
        %v1165 = vadd.f32 %v1060, %v1151
        %v1166 = vadd.f32 %v1061, %v1154
        %v1167 = vadd.f32 %v1062, %v1159
        %v1168 = vadd.f32 %v1063, %v1162
        %v1169 = vmax.f32 %v1165, 0.0
        %v1170 = vmax.f32 %v1166, 0.0
        %v1171 = vmax.f32 %v1167, 0.0
        %v1172 = vmax.f32 %v1168, 0.0
        %1173 = vst [vmem:[%s393] sm:$0xff] %v1169
        %1174 = vst [vmem:[%s393 + $0x8] sm:$0xff] %v1170
        %1175 = vst [vmem:[%s393 + $0x10] sm:$0xff] %v1171
        %1176 = vst [vmem:[%s393 + $0x18] sm:$0xff] %v1172
        %s1177 = sand.u32 %s226, 1
        %s1178 = scalar_lea.sflag [#allocation6], %s1177
        %s1179 = sand.u32 %s226, 1
        %s1180 = smul.addr %s1179, 32
        %s1181 = scalar_lea.vmem [#allocation5], %s1180
        // Predicated region
        $region98: #{tpu_custom_call.1} parent=88 // pred_check
          %p1182 = pneg %p236
        $region99: #{tpu_custom_call.1} parent=88 // pred_check_branch
          %1184 = sbr.rel (%p1182) target = $region101
        $region100: #{tpu_custom_call.1} parent=88 // pred_region
          %s1186 = ssub.s32 512, 512
          %1187 = vsyncadd %s1178, %s1186
          %s1188 = smul.addr %s26, 12
          %s1189 = sadd.s32 %s27, %s1188
          %s1190 = smul.addr %s1189, 128
          %s1191 = scalar_lea.hbm %s8, %s1190
          %s1192 = sshll.u32 %s1181, 4
          %s1193 = int_to_ptr.vmem [resolvable:$true] %s1192
          %1198 = dma.vmem_to_hbm [thread:$0]  %s1193, 512, %s1191, %s1178, 128, 384, 8
        $region101: #{tpu_custom_call.1} parent=88 // pred_fallthru
          _
      $region89: #{tpu_custom_call.1} parent=5 // pred_fallthru
        _
      %p1199 = scmp.le.s32.totalorder 2, %s17
      // Predicated region
      $region102: #{tpu_custom_call.1} parent=5 // pred_check
        %p1200 = pneg %p1199
      $region103: #{tpu_custom_call.1} parent=5 // pred_check_branch
        %1202 = sbr.rel (%p1200) target = $region105
      $region104: #{tpu_custom_call.1} parent=5 // pred_region
        %s1203 = ssub.s32 %s17, 2
        // Predicated region
        $region106: #{tpu_custom_call.1} parent=104 // pred_check
          %p1204 = pneg %p242
        $region107: #{tpu_custom_call.1} parent=104 // pred_check_branch
          %1206 = sbr.rel (%p1204) target = $region109
        $region108: #{tpu_custom_call.1} parent=104 // pred_region
          %s1207 = sand.u32 %s227, 1
          %s1208 = scalar_lea.sflag [#allocation6], %s1207
          %s1209 = sand.u32 %s227, 1
          %s1210 = smul.addr %s1209, 32
          %s1211 = scalar_lea.vmem [#allocation5], %s1210
          %1212 = dma.done %s1208, 512
        $region109: #{tpu_custom_call.1} parent=104 // pred_fallthru
          _
      $region105: #{tpu_custom_call.1} parent=5 // pred_fallthru
        _
    $region6: #{tpu_custom_call.1} parent=1 // loop_footer
      %s21 = sadd.s32 1, %s17
    $region7: #{tpu_custom_call.1} parent=1 // loop_footer_branch
      %16 = sbr.rel target = $region3
    $region8: #{tpu_custom_call.1} parent=1 // loop_exit
      _
    %1213 = vsyncpa [#allocation6], 1
    %s1214 = scalar_lea.sflag [#allocation6], 1
    %1215 = vsyncpa %s1214, 1

</llo_original>
